<compile_context>
chip_gen: v7x
topology: tpu7x:2x2x1
jax: 0.10.0
libtpu: 0.0.40
codegen_flags: <defaults>
</compile_context>

<pallas_src>
import math
import jax
import jax.numpy as jnp
from jax import lax
from jax.experimental import pallas as pl
from jax.experimental.pallas import tpu as pltpu


# ----------------------------------------------------------------------------------
# Pallas kernel: per-batch-tile bidirectional LSTM recurrence + hidden-state time-sum.
# Since the linear head and the mean over time are both linear,
#   mean_t(Linear(concat(hf_t, hb_t))) == Linear(concat(mean hf, mean hb)),
# the kernel only produces mean_h = (B_TILE, 2H); the head runs in XLA.
# ----------------------------------------------------------------------------------
def _disc_t_kernel(gx_ref,      # (T, B_TILE, 8H) precomputed x@Wih + b, time-major;
                                #   cols [i_f,f_f,o_f,g_f | i_b,f_b,o_b,g_b], bwd half
                                #   already time-reversed.  bf16 or f32.
                   whh_f_ref,   # (H, 4H) forward hidden->gate weights, cols [i,f,o,g]
                   whh_b_ref,   # (H, 4H) backward hidden->gate weights
                   out_ref):    # (B_TILE, 2H) f32: [mean hf | mean hb]
    T, Bt, _ = gx_ref.shape
    H = whh_f_ref.shape[0]
    H3, H4 = 3 * H, 4 * H

    whh_f = whh_f_ref[...]
    whh_b = whh_b_ref[...]
    mxu_dtype = whh_f.dtype                      # bf16 (fast path) or f32

    zero = jnp.zeros((Bt, H), jnp.float32)

    def cell(h, c, s, gx_t, whh):
        # Dense (B_TILE, H) x (H, 4H) MXU dot, f32 accumulation.
        g = (jnp.dot(h.astype(mxu_dtype), whh, preferred_element_type=jnp.float32)
             + gx_t.astype(jnp.float32))
        sg = jax.nn.sigmoid(g[:, :H3])           # one contiguous EUP pass over i|f|o
        gc = jnp.tanh(g[:, H3:])                 # candidate gate
        i_g = sg[:, 0:H]
        f_g = sg[:, H:2 * H]
        o_g = sg[:, 2 * H:H3]
        c_new = f_g * c + i_g * gc               # f32 state
        h_new = o_g * jnp.tanh(c_new)
        return h_new, c_new, s + h_new           # f32 running sum

    def step(t, carry):
        hf, cf, sf, hb, cb, sb = carry
        gx_t = gx_ref[t]                         # (B_TILE, 8H)
        hf, cf, sf = cell(hf, cf, sf, gx_t[:, :H4], whh_f)
        hb, cb, sb = cell(hb, cb, sb, gx_t[:, H4:], whh_b)
        return hf, cf, sf, hb, cb, sb

    # T is a compile-time constant -> fully unroll the short serial loop.
    _, _, sf, _, _, sb = lax.fori_loop(
        0, T, step, (zero, zero, zero, zero, zero, zero), unroll=True)

    inv_t = jnp.float32(1.0 / T)
    out_ref[...] = (jnp.concatenate([sf, sb], axis=-1) * inv_t).astype(out_ref.dtype)


# ----------------------------------------------------------------------------------
# Wrapper: gate reordering + hoisted input projection (XLA), batch-tiled pallas_call,
# then the (lane-dense-hoisted) linear head in XLA.
# ----------------------------------------------------------------------------------
def discriminator_t_forward(seq, params, *, use_bf16=True, b_tile=None):
    """seq: (B, T, num_inputs) batch_first, like the PyTorch module."""
    B, T, _ = seq.shape
    H = params["whh_f"].shape[1]
    compute_dtype = jnp.bfloat16 if use_bf16 else jnp.float32

    x = seq.astype(jnp.float32)                                   # no (B,T) transpose of x

    def split(w):  # split last dim (4H, PyTorch order i,f,g,o) into per-gate pieces
        return w[..., 0:H], w[..., H:2 * H], w[..., 2 * H:3 * H], w[..., 3 * H:4 * H]

    def reorder(w):  # -> [i, f, o, g]
        i, f, g, o = split(w)
        return jnp.concatenate([i, f, o, g], axis=-1)

    # --- per-direction weights / biases, reordered to [i, f, o, g] -----------------
    wih_f_r = reorder(params["wih_f"].T)                          # (Din, 4H)
    wih_b_r = reorder(params["wih_b"].T)
    b_f_r = reorder(params["bih_f"] + params["bhh_f"])            # (4H,)
    b_b_r = reorder(params["bih_b"] + params["bhh_b"])
    whh_f_r = reorder(params["whh_f"].T).astype(compute_dtype)    # (H, 4H) dense
    whh_b_r = reorder(params["whh_b"].T).astype(compute_dtype)

    # --- hoisted input projection: one big matmul per direction (plain XLA) --------
    gx_f = jnp.einsum("btd,dg->btg", x, wih_f_r) + b_f_r          # (B, T, 4H)
    gx_b = jnp.einsum("btd,dg->btg", x, wih_b_r) + b_b_r
    gx_b = gx_b[:, ::-1, :]                                       # backward reads reversed time
    gx = jnp.concatenate([gx_f, gx_b], axis=-1)                   # (B, T, 8H): [fwd | bwd]

    # --- batch tiling (grid axis; 128 rows per tile to feed the MXU) ---------------
    if b_tile is None:
        b_tile = 128 if B >= 128 else ((B + 7) // 8) * 8          # sublane-aligned
    n_tiles = -(-B // b_tile)
    b_pad = n_tiles * b_tile
    if b_pad != B:
        gx = jnp.pad(gx, ((0, b_pad - B), (0, 0), (0, 0)))        # pad rows are discarded
    gx = jnp.transpose(gx, (1, 0, 2)).astype(compute_dtype)       # (T, B_pad, 8H) time-major

    # --- explicit VMEM budget (double-buffered gx/out blocks + resident weights) ---
    itemsize = 2 if use_bf16 else 4
    gx_block = T * b_tile * 8 * H * itemsize
    out_block = b_tile * 2 * H * 4
    whh_bytes = 2 * H * 4 * H * itemsize
    vmem_limit = int(min(max(2 * (gx_block + out_block) + 2 * whh_bytes + (4 << 20),
                             32 << 20), 48 << 20))

    mean_h = pl.pallas_call(
        _disc_t_kernel,
        out_shape=jax.ShapeDtypeStruct((b_pad, 2 * H), jnp.float32),
        grid_spec=pltpu.PrefetchScalarGridSpec(
            num_scalar_prefetch=0,
            grid=(n_tiles,),
            in_specs=[
                pl.BlockSpec((T, b_tile, 8 * H), lambda i: (0, i, 0)),
                pl.BlockSpec((H, 4 * H), lambda i: (0, 0)),
                pl.BlockSpec((H, 4 * H), lambda i: (0, 0)),
            ],
            out_specs=pl.BlockSpec((b_tile, 2 * H), lambda i: (i, 0)),
        ),
        compiler_params=pltpu.CompilerParams(
            dimension_semantics=("parallel",),        # v7x: shard batch tiles across TCs
            vmem_limit_bytes=vmem_limit),
    )(gx, whh_f_r, whh_b_r)

    # --- linear head (+ mean/Linear commutation) in XLA: lane-dense kernel output --
    mean_h = mean_h[:B]                                           # drop batch padding
    wlin_t = params["w_lin"].T.astype(jnp.float32)                # (2H, num_out)
    return mean_h @ wlin_t + params["b_lin"].astype(jnp.float32)  # (B, num_out)


# ----------------------------------------------------------------------------------
# Deterministic parameter init (mirrors shapes of nn.LSTM / nn.Linear + weights_init_)
# ----------------------------------------------------------------------------------
def init_params(key, num_inputs, num_outputs, hidden_dim):
    H = hidden_dim
    k = 1.0 / math.sqrt(H)
    keys = jax.random.split(key, 9)
    u = lambda kk, shape: jax.random.uniform(kk, shape, jnp.float32, -k, k)

    # xavier_uniform for the linear head (gain=1), zero bias — matches weights_init_.
    fan_in, fan_out = 2 * H, num_outputs
    bound = math.sqrt(6.0 / (fan_in + fan_out))
    w_lin = jax.random.uniform(keys[8], (num_outputs, 2 * H), jnp.float32, -bound, bound)

    return {
        "wih_f": u(keys[0], (4 * H, num_inputs)),
        "whh_f": u(keys[1], (4 * H, H)),
        "bih_f": u(keys[2], (4 * H,)),
        "bhh_f": u(keys[3], (4 * H,)),
        "wih_b": u(keys[4], (4 * H, num_inputs)),
        "whh_b": u(keys[5], (4 * H, H)),
        "bih_b": u(keys[6], (4 * H,)),
        "bhh_b": u(keys[7], (4 * H,)),
        "w_lin": w_lin,
        "b_lin": jnp.zeros((num_outputs,), jnp.float32),
    }


# ----------------------------------------------------------------------------------
# Pure-JAX reference (PyTorch gate order / math, lax.scan) for a correctness check.
# ----------------------------------------------------------------------------------
def reference_forward(seq, params):
    B, T, _ = seq.shape
    H = params["whh_f"].shape[1]

    def run_dir(x_tm, wih, whh, bih, bhh):
        def cell(carry, x_t):
            h, c = carry
            g = x_t @ wih.T + h @ whh.T + bih + bhh
            i_g = jax.nn.sigmoid(g[:, 0 * H:1 * H])
            f_g = jax.nn.sigmoid(g[:, 1 * H:2 * H])
            g_g = jnp.tanh(g[:, 2 * H:3 * H])
            o_g = jax.nn.sigmoid(g[:, 3 * H:4 * H])
            c = f_g * c + i_g * g_g
            h = o_g * jnp.tanh(c)
            return (h, c), h
        z = jnp.zeros((B, H), jnp.float32)
        _, hs = lax.scan(cell, (z, z), x_tm)
        return hs  # (T, B, H)

    x_tm = jnp.transpose(seq, (1, 0, 2)).astype(jnp.float32)
    hf = run_dir(x_tm, params["wih_f"], params["whh_f"], params["bih_f"], params["bhh_f"])
    hb = run_dir(x_tm[::-1], params["wih_b"], params["whh_b"], params["bih_b"], params["bhh_b"])[::-1]
    out_seq = jnp.concatenate([hf, hb], axis=-1)                  # (T, B, 2H)
    y = out_seq @ params["w_lin"].T + params["b_lin"]             # (T, B, num_out)
    return jnp.mean(y, axis=0)                                    # (B, num_out)


if __name__ == "__main__":
    B, T = 2, 8
    num_inputs, num_outputs, hidden_dim = 4, 1, 32

    key = jax.random.PRNGKey(0)
    k_params, k_seq = jax.random.split(key)
    params = init_params(k_params, num_inputs, num_outputs, hidden_dim)
    seq = jax.random.normal(k_seq, (B, T, num_inputs), jnp.float32)

    ref = jax.block_until_ready(reference_forward(seq, params))

    # f32 path: exact-semantics check against the lax.scan reference.
    out_f32 = jax.block_until_ready(discriminator_t_forward(seq, params, use_bf16=False))
    assert out_f32.shape == (B, num_outputs)
    assert jnp.allclose(out_f32, ref, atol=1e-4, rtol=1e-4), (out_f32, ref)

    # bf16-MXU fast path: relaxed tolerance (bf16 operands, f32 accumulation).
    out_bf16 = jax.block_until_ready(discriminator_t_forward(seq, params, use_bf16=True))
    assert out_bf16.shape == (B, num_outputs)
    assert jnp.allclose(out_bf16, ref, atol=1e-1, rtol=1e-1), (out_bf16, ref)

    print("KERNEL_OK")
</pallas_src>

<mosaic_0001>
module attributes {stable_mosaic.version = 11 : i64} {
  func.func @_disc_t_kernel(%arg0: i32, %arg1: memref<8x8x256xf32, #tpu.memory_space<vmem>>, %arg2: memref<32x128xf32, #tpu.memory_space<vmem>>, %arg3: memref<32x128xf32, #tpu.memory_space<vmem>>, %arg4: memref<8x64xf32, #tpu.memory_space<vmem>>) attributes {dimension_semantics = [#tpu.dimension_semantics<parallel>], iteration_bounds = array<i64: 1>, scalar_prefetch = 0 : i64, scratch_operands = 0 : i64, tpu.core_type = #tpu.core_type<tc>, window_params = [{transform_indices = @transform_0, window_bounds = array<i64: 8, 8, 256>}, {pipeline_mode = #tpu.pipeline_mode<synchronous>, transform_indices = @transform_1, window_bounds = array<i64: 32, 128>}, {pipeline_mode = #tpu.pipeline_mode<synchronous>, transform_indices = @transform_2, window_bounds = array<i64: 32, 128>}, {transform_indices = @transform_3, window_bounds = array<i64: 8, 64>}]} {
    %c0 = arith.constant 0 : index
    %c0_0 = arith.constant 0 : index
    %0 = vector.load %arg2[%c0, %c0_0] : memref<32x128xf32, #tpu.memory_space<vmem>>, vector<32x128xf32>
    %c0_1 = arith.constant 0 : index
    %c0_2 = arith.constant 0 : index
    %1 = vector.load %arg3[%c0_1, %c0_2] : memref<32x128xf32, #tpu.memory_space<vmem>>, vector<32x128xf32>
    %cst = arith.constant 0.000000e+00 : f32
    %2 = vector.broadcast %cst : f32 to vector<8x32xf32>
    %c0_i32 = arith.constant 0 : i32
    %3 = arith.index_cast %c0_i32 : i32 to index
    %c0_3 = arith.constant 0 : index
    %c0_4 = arith.constant 0 : index
    %4 = vector.load %arg1[%3, %c0_3, %c0_4] : memref<8x8x256xf32, #tpu.memory_space<vmem>>, vector<1x8x256xf32>
    %5 = vector.shape_cast %4 : vector<1x8x256xf32> to vector<8x256xf32>
    %6 = vector.extract_strided_slice %5 {offsets = [0, 0], sizes = [8, 128], strides = [1, 1]} : vector<8x256xf32> to vector<8x128xf32>
    %cst_5 = arith.constant dense<0.000000e+00> : vector<8x128xf32>
    %7 = tpu.matmul %2, %0, %cst_5 {dimension_numbers = #tpu.dot_dimension_numbers<[1], [0], [0], [1], [0, 0, 1, 1], [], []>} : vector<8x32xf32>, vector<32x128xf32>, vector<8x128xf32> -> vector<8x128xf32>
    %8 = arith.addf %7, %6 : vector<8x128xf32>
    %9 = vector.extract_strided_slice %8 {offsets = [0, 0], sizes = [8, 96], strides = [1, 1]} : vector<8x128xf32> to vector<8x96xf32>
    %10 = arith.negf %9 : vector<8x96xf32>
    %11 = math.exp %10 : vector<8x96xf32>
    %cst_6 = arith.constant 1.000000e+00 : f32
    %12 = vector.broadcast %cst_6 : f32 to vector<8x96xf32>
    %13 = arith.addf %12, %11 : vector<8x96xf32>
    %14 = arith.divf %12, %13 : vector<8x96xf32>
    %15 = vector.extract_strided_slice %8 {offsets = [0, 96], sizes = [8, 32], strides = [1, 1]} : vector<8x128xf32> to vector<8x32xf32>
    %16 = math.tanh %15 : vector<8x32xf32>
    %17 = vector.extract_strided_slice %14 {offsets = [0, 0], sizes = [8, 32], strides = [1, 1]} : vector<8x96xf32> to vector<8x32xf32>
    %18 = vector.extract_strided_slice %14 {offsets = [0, 32], sizes = [8, 32], strides = [1, 1]} : vector<8x96xf32> to vector<8x32xf32>
    %19 = vector.extract_strided_slice %14 {offsets = [0, 64], sizes = [8, 32], strides = [1, 1]} : vector<8x96xf32> to vector<8x32xf32>
    %20 = arith.mulf %18, %2 : vector<8x32xf32>
    %21 = arith.mulf %17, %16 : vector<8x32xf32>
    %22 = arith.addf %20, %21 : vector<8x32xf32>
    %23 = math.tanh %22 : vector<8x32xf32>
    %24 = arith.mulf %19, %23 : vector<8x32xf32>
    %25 = arith.addf %2, %24 : vector<8x32xf32>
    %26 = vector.extract_strided_slice %5 {offsets = [0, 128], sizes = [8, 128], strides = [1, 1]} : vector<8x256xf32> to vector<8x128xf32>
    %cst_7 = arith.constant dense<0.000000e+00> : vector<8x128xf32>
    %27 = tpu.matmul %2, %1, %cst_7 {dimension_numbers = #tpu.dot_dimension_numbers<[1], [0], [0], [1], [0, 0, 1, 1], [], []>} : vector<8x32xf32>, vector<32x128xf32>, vector<8x128xf32> -> vector<8x128xf32>
    %28 = arith.addf %27, %26 : vector<8x128xf32>
    %29 = vector.extract_strided_slice %28 {offsets = [0, 0], sizes = [8, 96], strides = [1, 1]} : vector<8x128xf32> to vector<8x96xf32>
    %30 = arith.negf %29 : vector<8x96xf32>
    %31 = math.exp %30 : vector<8x96xf32>
    %cst_8 = arith.constant 1.000000e+00 : f32
    %32 = vector.broadcast %cst_8 : f32 to vector<8x96xf32>
    %33 = arith.addf %32, %31 : vector<8x96xf32>
    %34 = arith.divf %32, %33 : vector<8x96xf32>
    %35 = vector.extract_strided_slice %28 {offsets = [0, 96], sizes = [8, 32], strides = [1, 1]} : vector<8x128xf32> to vector<8x32xf32>
    %36 = math.tanh %35 : vector<8x32xf32>
    %37 = vector.extract_strided_slice %34 {offsets = [0, 0], sizes = [8, 32], strides = [1, 1]} : vector<8x96xf32> to vector<8x32xf32>
    %38 = vector.extract_strided_slice %34 {offsets = [0, 32], sizes = [8, 32], strides = [1, 1]} : vector<8x96xf32> to vector<8x32xf32>
    %39 = vector.extract_strided_slice %34 {offsets = [0, 64], sizes = [8, 32], strides = [1, 1]} : vector<8x96xf32> to vector<8x32xf32>
    %40 = arith.mulf %38, %2 : vector<8x32xf32>
    %41 = arith.mulf %37, %36 : vector<8x32xf32>
    %42 = arith.addf %40, %41 : vector<8x32xf32>
    %43 = math.tanh %42 : vector<8x32xf32>
    %44 = arith.mulf %39, %43 : vector<8x32xf32>
    %45 = arith.addf %2, %44 : vector<8x32xf32>
    %c1_i32 = arith.constant 1 : i32
    %46 = arith.index_cast %c1_i32 : i32 to index
    %c0_9 = arith.constant 0 : index
    %c0_10 = arith.constant 0 : index
    %47 = vector.load %arg1[%46, %c0_9, %c0_10] : memref<8x8x256xf32, #tpu.memory_space<vmem>>, vector<1x8x256xf32>
    %48 = vector.shape_cast %47 : vector<1x8x256xf32> to vector<8x256xf32>
    %49 = vector.extract_strided_slice %48 {offsets = [0, 0], sizes = [8, 128], strides = [1, 1]} : vector<8x256xf32> to vector<8x128xf32>
    %cst_11 = arith.constant dense<0.000000e+00> : vector<8x128xf32>
    %50 = tpu.matmul %24, %0, %cst_11 {dimension_numbers = #tpu.dot_dimension_numbers<[1], [0], [0], [1], [0, 0, 1, 1], [], []>} : vector<8x32xf32>, vector<32x128xf32>, vector<8x128xf32> -> vector<8x128xf32>
    %51 = arith.addf %50, %49 : vector<8x128xf32>
    %52 = vector.extract_strided_slice %51 {offsets = [0, 0], sizes = [8, 96], strides = [1, 1]} : vector<8x128xf32> to vector<8x96xf32>
    %53 = arith.negf %52 : vector<8x96xf32>
    %54 = math.exp %53 : vector<8x96xf32>
    %cst_12 = arith.constant 1.000000e+00 : f32
    %55 = vector.broadcast %cst_12 : f32 to vector<8x96xf32>
    %56 = arith.addf %55, %54 : vector<8x96xf32>
    %57 = arith.divf %55, %56 : vector<8x96xf32>
    %58 = vector.extract_strided_slice %51 {offsets = [0, 96], sizes = [8, 32], strides = [1, 1]} : vector<8x128xf32> to vector<8x32xf32>
    %59 = math.tanh %58 : vector<8x32xf32>
    %60 = vector.extract_strided_slice %57 {offsets = [0, 0], sizes = [8, 32], strides = [1, 1]} : vector<8x96xf32> to vector<8x32xf32>
    %61 = vector.extract_strided_slice %57 {offsets = [0, 32], sizes = [8, 32], strides = [1, 1]} : vector<8x96xf32> to vector<8x32xf32>
    %62 = vector.extract_strided_slice %57 {offsets = [0, 64], sizes = [8, 32], strides = [1, 1]} : vector<8x96xf32> to vector<8x32xf32>
    %63 = arith.mulf %61, %22 : vector<8x32xf32>
    %64 = arith.mulf %60, %59 : vector<8x32xf32>
    %65 = arith.addf %63, %64 : vector<8x32xf32>
    %66 = math.tanh %65 : vector<8x32xf32>
    %67 = arith.mulf %62, %66 : vector<8x32xf32>
    %68 = arith.addf %25, %67 : vector<8x32xf32>
    %69 = vector.extract_strided_slice %48 {offsets = [0, 128], sizes = [8, 128], strides = [1, 1]} : vector<8x256xf32> to vector<8x128xf32>
    %cst_13 = arith.constant dense<0.000000e+00> : vector<8x128xf32>
    %70 = tpu.matmul %44, %1, %cst_13 {dimension_numbers = #tpu.dot_dimension_numbers<[1], [0], [0], [1], [0, 0, 1, 1], [], []>} : vector<8x32xf32>, vector<32x128xf32>, vector<8x128xf32> -> vector<8x128xf32>
    %71 = arith.addf %70, %69 : vector<8x128xf32>
    %72 = vector.extract_strided_slice %71 {offsets = [0, 0], sizes = [8, 96], strides = [1, 1]} : vector<8x128xf32> to vector<8x96xf32>
    %73 = arith.negf %72 : vector<8x96xf32>
    %74 = math.exp %73 : vector<8x96xf32>
    %cst_14 = arith.constant 1.000000e+00 : f32
    %75 = vector.broadcast %cst_14 : f32 to vector<8x96xf32>
    %76 = arith.addf %75, %74 : vector<8x96xf32>
    %77 = arith.divf %75, %76 : vector<8x96xf32>
    %78 = vector.extract_strided_slice %71 {offsets = [0, 96], sizes = [8, 32], strides = [1, 1]} : vector<8x128xf32> to vector<8x32xf32>
    %79 = math.tanh %78 : vector<8x32xf32>
    %80 = vector.extract_strided_slice %77 {offsets = [0, 0], sizes = [8, 32], strides = [1, 1]} : vector<8x96xf32> to vector<8x32xf32>
    %81 = vector.extract_strided_slice %77 {offsets = [0, 32], sizes = [8, 32], strides = [1, 1]} : vector<8x96xf32> to vector<8x32xf32>
    %82 = vector.extract_strided_slice %77 {offsets = [0, 64], sizes = [8, 32], strides = [1, 1]} : vector<8x96xf32> to vector<8x32xf32>
    %83 = arith.mulf %81, %42 : vector<8x32xf32>
    %84 = arith.mulf %80, %79 : vector<8x32xf32>
    %85 = arith.addf %83, %84 : vector<8x32xf32>
    %86 = math.tanh %85 : vector<8x32xf32>
    %87 = arith.mulf %82, %86 : vector<8x32xf32>
    %88 = arith.addf %45, %87 : vector<8x32xf32>
    %c2_i32 = arith.constant 2 : i32
    %89 = arith.index_cast %c2_i32 : i32 to index
    %c0_15 = arith.constant 0 : index
    %c0_16 = arith.constant 0 : index
    %90 = vector.load %arg1[%89, %c0_15, %c0_16] : memref<8x8x256xf32, #tpu.memory_space<vmem>>, vector<1x8x256xf32>
    %91 = vector.shape_cast %90 : vector<1x8x256xf32> to vector<8x256xf32>
    %92 = vector.extract_strided_slice %91 {offsets = [0, 0], sizes = [8, 128], strides = [1, 1]} : vector<8x256xf32> to vector<8x128xf32>
    %cst_17 = arith.constant dense<0.000000e+00> : vector<8x128xf32>
    %93 = tpu.matmul %67, %0, %cst_17 {dimension_numbers = #tpu.dot_dimension_numbers<[1], [0], [0], [1], [0, 0, 1, 1], [], []>} : vector<8x32xf32>, vector<32x128xf32>, vector<8x128xf32> -> vector<8x128xf32>
    %94 = arith.addf %93, %92 : vector<8x128xf32>
    %95 = vector.extract_strided_slice %94 {offsets = [0, 0], sizes = [8, 96], strides = [1, 1]} : vector<8x128xf32> to vector<8x96xf32>
    %96 = arith.negf %95 : vector<8x96xf32>
    %97 = math.exp %96 : vector<8x96xf32>
    %cst_18 = arith.constant 1.000000e+00 : f32
    %98 = vector.broadcast %cst_18 : f32 to vector<8x96xf32>
    %99 = arith.addf %98, %97 : vector<8x96xf32>
    %100 = arith.divf %98, %99 : vector<8x96xf32>
    %101 = vector.extract_strided_slice %94 {offsets = [0, 96], sizes = [8, 32], strides = [1, 1]} : vector<8x128xf32> to vector<8x32xf32>
    %102 = math.tanh %101 : vector<8x32xf32>
    %103 = vector.extract_strided_slice %100 {offsets = [0, 0], sizes = [8, 32], strides = [1, 1]} : vector<8x96xf32> to vector<8x32xf32>
    %104 = vector.extract_strided_slice %100 {offsets = [0, 32], sizes = [8, 32], strides = [1, 1]} : vector<8x96xf32> to vector<8x32xf32>
    %105 = vector.extract_strided_slice %100 {offsets = [0, 64], sizes = [8, 32], strides = [1, 1]} : vector<8x96xf32> to vector<8x32xf32>
    %106 = arith.mulf %104, %65 : vector<8x32xf32>
    %107 = arith.mulf %103, %102 : vector<8x32xf32>
    %108 = arith.addf %106, %107 : vector<8x32xf32>
    %109 = math.tanh %108 : vector<8x32xf32>
    %110 = arith.mulf %105, %109 : vector<8x32xf32>
    %111 = arith.addf %68, %110 : vector<8x32xf32>
    %112 = vector.extract_strided_slice %91 {offsets = [0, 128], sizes = [8, 128], strides = [1, 1]} : vector<8x256xf32> to vector<8x128xf32>
    %cst_19 = arith.constant dense<0.000000e+00> : vector<8x128xf32>
    %113 = tpu.matmul %87, %1, %cst_19 {dimension_numbers = #tpu.dot_dimension_numbers<[1], [0], [0], [1], [0, 0, 1, 1], [], []>} : vector<8x32xf32>, vector<32x128xf32>, vector<8x128xf32> -> vector<8x128xf32>
    %114 = arith.addf %113, %112 : vector<8x128xf32>
    %115 = vector.extract_strided_slice %114 {offsets = [0, 0], sizes = [8, 96], strides = [1, 1]} : vector<8x128xf32> to vector<8x96xf32>
    %116 = arith.negf %115 : vector<8x96xf32>
    %117 = math.exp %116 : vector<8x96xf32>
    %cst_20 = arith.constant 1.000000e+00 : f32
    %118 = vector.broadcast %cst_20 : f32 to vector<8x96xf32>
    %119 = arith.addf %118, %117 : vector<8x96xf32>
    %120 = arith.divf %118, %119 : vector<8x96xf32>
    %121 = vector.extract_strided_slice %114 {offsets = [0, 96], sizes = [8, 32], strides = [1, 1]} : vector<8x128xf32> to vector<8x32xf32>
    %122 = math.tanh %121 : vector<8x32xf32>
    %123 = vector.extract_strided_slice %120 {offsets = [0, 0], sizes = [8, 32], strides = [1, 1]} : vector<8x96xf32> to vector<8x32xf32>
    %124 = vector.extract_strided_slice %120 {offsets = [0, 32], sizes = [8, 32], strides = [1, 1]} : vector<8x96xf32> to vector<8x32xf32>
    %125 = vector.extract_strided_slice %120 {offsets = [0, 64], sizes = [8, 32], strides = [1, 1]} : vector<8x96xf32> to vector<8x32xf32>
    %126 = arith.mulf %124, %85 : vector<8x32xf32>
    %127 = arith.mulf %123, %122 : vector<8x32xf32>
    %128 = arith.addf %126, %127 : vector<8x32xf32>
    %129 = math.tanh %128 : vector<8x32xf32>
    %130 = arith.mulf %125, %129 : vector<8x32xf32>
    %131 = arith.addf %88, %130 : vector<8x32xf32>
    %c3_i32 = arith.constant 3 : i32
    %132 = arith.index_cast %c3_i32 : i32 to index
    %c0_21 = arith.constant 0 : index
    %c0_22 = arith.constant 0 : index
    %133 = vector.load %arg1[%132, %c0_21, %c0_22] : memref<8x8x256xf32, #tpu.memory_space<vmem>>, vector<1x8x256xf32>
    %134 = vector.shape_cast %133 : vector<1x8x256xf32> to vector<8x256xf32>
    %135 = vector.extract_strided_slice %134 {offsets = [0, 0], sizes = [8, 128], strides = [1, 1]} : vector<8x256xf32> to vector<8x128xf32>
    %cst_23 = arith.constant dense<0.000000e+00> : vector<8x128xf32>
    %136 = tpu.matmul %110, %0, %cst_23 {dimension_numbers = #tpu.dot_dimension_numbers<[1], [0], [0], [1], [0, 0, 1, 1], [], []>} : vector<8x32xf32>, vector<32x128xf32>, vector<8x128xf32> -> vector<8x128xf32>
    %137 = arith.addf %136, %135 : vector<8x128xf32>
    %138 = vector.extract_strided_slice %137 {offsets = [0, 0], sizes = [8, 96], strides = [1, 1]} : vector<8x128xf32> to vector<8x96xf32>
    %139 = arith.negf %138 : vector<8x96xf32>
    %140 = math.exp %139 : vector<8x96xf32>
    %cst_24 = arith.constant 1.000000e+00 : f32
    %141 = vector.broadcast %cst_24 : f32 to vector<8x96xf32>
    %142 = arith.addf %141, %140 : vector<8x96xf32>
    %143 = arith.divf %141, %142 : vector<8x96xf32>
    %144 = vector.extract_strided_slice %137 {offsets = [0, 96], sizes = [8, 32], strides = [1, 1]} : vector<8x128xf32> to vector<8x32xf32>
    %145 = math.tanh %144 : vector<8x32xf32>
    %146 = vector.extract_strided_slice %143 {offsets = [0, 0], sizes = [8, 32], strides = [1, 1]} : vector<8x96xf32> to vector<8x32xf32>
    %147 = vector.extract_strided_slice %143 {offsets = [0, 32], sizes = [8, 32], strides = [1, 1]} : vector<8x96xf32> to vector<8x32xf32>
    %148 = vector.extract_strided_slice %143 {offsets = [0, 64], sizes = [8, 32], strides = [1, 1]} : vector<8x96xf32> to vector<8x32xf32>
    %149 = arith.mulf %147, %108 : vector<8x32xf32>
    %150 = arith.mulf %146, %145 : vector<8x32xf32>
    %151 = arith.addf %149, %150 : vector<8x32xf32>
    %152 = math.tanh %151 : vector<8x32xf32>
    %153 = arith.mulf %148, %152 : vector<8x32xf32>
    %154 = arith.addf %111, %153 : vector<8x32xf32>
    %155 = vector.extract_strided_slice %134 {offsets = [0, 128], sizes = [8, 128], strides = [1, 1]} : vector<8x256xf32> to vector<8x128xf32>
    %cst_25 = arith.constant dense<0.000000e+00> : vector<8x128xf32>
    %156 = tpu.matmul %130, %1, %cst_25 {dimension_numbers = #tpu.dot_dimension_numbers<[1], [0], [0], [1], [0, 0, 1, 1], [], []>} : vector<8x32xf32>, vector<32x128xf32>, vector<8x128xf32> -> vector<8x128xf32>
    %157 = arith.addf %156, %155 : vector<8x128xf32>
    %158 = vector.extract_strided_slice %157 {offsets = [0, 0], sizes = [8, 96], strides = [1, 1]} : vector<8x128xf32> to vector<8x96xf32>
    %159 = arith.negf %158 : vector<8x96xf32>
    %160 = math.exp %159 : vector<8x96xf32>
    %cst_26 = arith.constant 1.000000e+00 : f32
    %161 = vector.broadcast %cst_26 : f32 to vector<8x96xf32>
    %162 = arith.addf %161, %160 : vector<8x96xf32>
    %163 = arith.divf %161, %162 : vector<8x96xf32>
    %164 = vector.extract_strided_slice %157 {offsets = [0, 96], sizes = [8, 32], strides = [1, 1]} : vector<8x128xf32> to vector<8x32xf32>
    %165 = math.tanh %164 : vector<8x32xf32>
    %166 = vector.extract_strided_slice %163 {offsets = [0, 0], sizes = [8, 32], strides = [1, 1]} : vector<8x96xf32> to vector<8x32xf32>
    %167 = vector.extract_strided_slice %163 {offsets = [0, 32], sizes = [8, 32], strides = [1, 1]} : vector<8x96xf32> to vector<8x32xf32>
    %168 = vector.extract_strided_slice %163 {offsets = [0, 64], sizes = [8, 32], strides = [1, 1]} : vector<8x96xf32> to vector<8x32xf32>
    %169 = arith.mulf %167, %128 : vector<8x32xf32>
    %170 = arith.mulf %166, %165 : vector<8x32xf32>
    %171 = arith.addf %169, %170 : vector<8x32xf32>
    %172 = math.tanh %171 : vector<8x32xf32>
    %173 = arith.mulf %168, %172 : vector<8x32xf32>
    %174 = arith.addf %131, %173 : vector<8x32xf32>
    %c4_i32 = arith.constant 4 : i32
    %175 = arith.index_cast %c4_i32 : i32 to index
    %c0_27 = arith.constant 0 : index
    %c0_28 = arith.constant 0 : index
    %176 = vector.load %arg1[%175, %c0_27, %c0_28] : memref<8x8x256xf32, #tpu.memory_space<vmem>>, vector<1x8x256xf32>
    %177 = vector.shape_cast %176 : vector<1x8x256xf32> to vector<8x256xf32>
    %178 = vector.extract_strided_slice %177 {offsets = [0, 0], sizes = [8, 128], strides = [1, 1]} : vector<8x256xf32> to vector<8x128xf32>
    %cst_29 = arith.constant dense<0.000000e+00> : vector<8x128xf32>
    %179 = tpu.matmul %153, %0, %cst_29 {dimension_numbers = #tpu.dot_dimension_numbers<[1], [0], [0], [1], [0, 0, 1, 1], [], []>} : vector<8x32xf32>, vector<32x128xf32>, vector<8x128xf32> -> vector<8x128xf32>
    %180 = arith.addf %179, %178 : vector<8x128xf32>
    %181 = vector.extract_strided_slice %180 {offsets = [0, 0], sizes = [8, 96], strides = [1, 1]} : vector<8x128xf32> to vector<8x96xf32>
    %182 = arith.negf %181 : vector<8x96xf32>
    %183 = math.exp %182 : vector<8x96xf32>
    %cst_30 = arith.constant 1.000000e+00 : f32
    %184 = vector.broadcast %cst_30 : f32 to vector<8x96xf32>
    %185 = arith.addf %184, %183 : vector<8x96xf32>
    %186 = arith.divf %184, %185 : vector<8x96xf32>
    %187 = vector.extract_strided_slice %180 {offsets = [0, 96], sizes = [8, 32], strides = [1, 1]} : vector<8x128xf32> to vector<8x32xf32>
    %188 = math.tanh %187 : vector<8x32xf32>
    %189 = vector.extract_strided_slice %186 {offsets = [0, 0], sizes = [8, 32], strides = [1, 1]} : vector<8x96xf32> to vector<8x32xf32>
    %190 = vector.extract_strided_slice %186 {offsets = [0, 32], sizes = [8, 32], strides = [1, 1]} : vector<8x96xf32> to vector<8x32xf32>
    %191 = vector.extract_strided_slice %186 {offsets = [0, 64], sizes = [8, 32], strides = [1, 1]} : vector<8x96xf32> to vector<8x32xf32>
    %192 = arith.mulf %190, %151 : vector<8x32xf32>
    %193 = arith.mulf %189, %188 : vector<8x32xf32>
    %194 = arith.addf %192, %193 : vector<8x32xf32>
    %195 = math.tanh %194 : vector<8x32xf32>
    %196 = arith.mulf %191, %195 : vector<8x32xf32>
    %197 = arith.addf %154, %196 : vector<8x32xf32>
    %198 = vector.extract_strided_slice %177 {offsets = [0, 128], sizes = [8, 128], strides = [1, 1]} : vector<8x256xf32> to vector<8x128xf32>
    %cst_31 = arith.constant dense<0.000000e+00> : vector<8x128xf32>
    %199 = tpu.matmul %173, %1, %cst_31 {dimension_numbers = #tpu.dot_dimension_numbers<[1], [0], [0], [1], [0, 0, 1, 1], [], []>} : vector<8x32xf32>, vector<32x128xf32>, vector<8x128xf32> -> vector<8x128xf32>
    %200 = arith.addf %199, %198 : vector<8x128xf32>
    %201 = vector.extract_strided_slice %200 {offsets = [0, 0], sizes = [8, 96], strides = [1, 1]} : vector<8x128xf32> to vector<8x96xf32>
    %202 = arith.negf %201 : vector<8x96xf32>
    %203 = math.exp %202 : vector<8x96xf32>
    %cst_32 = arith.constant 1.000000e+00 : f32
    %204 = vector.broadcast %cst_32 : f32 to vector<8x96xf32>
    %205 = arith.addf %204, %203 : vector<8x96xf32>
    %206 = arith.divf %204, %205 : vector<8x96xf32>
    %207 = vector.extract_strided_slice %200 {offsets = [0, 96], sizes = [8, 32], strides = [1, 1]} : vector<8x128xf32> to vector<8x32xf32>
    %208 = math.tanh %207 : vector<8x32xf32>
    %209 = vector.extract_strided_slice %206 {offsets = [0, 0], sizes = [8, 32], strides = [1, 1]} : vector<8x96xf32> to vector<8x32xf32>
    %210 = vector.extract_strided_slice %206 {offsets = [0, 32], sizes = [8, 32], strides = [1, 1]} : vector<8x96xf32> to vector<8x32xf32>
    %211 = vector.extract_strided_slice %206 {offsets = [0, 64], sizes = [8, 32], strides = [1, 1]} : vector<8x96xf32> to vector<8x32xf32>
    %212 = arith.mulf %210, %171 : vector<8x32xf32>
    %213 = arith.mulf %209, %208 : vector<8x32xf32>
    %214 = arith.addf %212, %213 : vector<8x32xf32>
    %215 = math.tanh %214 : vector<8x32xf32>
    %216 = arith.mulf %211, %215 : vector<8x32xf32>
    %217 = arith.addf %174, %216 : vector<8x32xf32>
    %c5_i32 = arith.constant 5 : i32
    %218 = arith.index_cast %c5_i32 : i32 to index
    %c0_33 = arith.constant 0 : index
    %c0_34 = arith.constant 0 : index
    %219 = vector.load %arg1[%218, %c0_33, %c0_34] : memref<8x8x256xf32, #tpu.memory_space<vmem>>, vector<1x8x256xf32>
    %220 = vector.shape_cast %219 : vector<1x8x256xf32> to vector<8x256xf32>
    %221 = vector.extract_strided_slice %220 {offsets = [0, 0], sizes = [8, 128], strides = [1, 1]} : vector<8x256xf32> to vector<8x128xf32>
    %cst_35 = arith.constant dense<0.000000e+00> : vector<8x128xf32>
    %222 = tpu.matmul %196, %0, %cst_35 {dimension_numbers = #tpu.dot_dimension_numbers<[1], [0], [0], [1], [0, 0, 1, 1], [], []>} : vector<8x32xf32>, vector<32x128xf32>, vector<8x128xf32> -> vector<8x128xf32>
    %223 = arith.addf %222, %221 : vector<8x128xf32>
    %224 = vector.extract_strided_slice %223 {offsets = [0, 0], sizes = [8, 96], strides = [1, 1]} : vector<8x128xf32> to vector<8x96xf32>
    %225 = arith.negf %224 : vector<8x96xf32>
    %226 = math.exp %225 : vector<8x96xf32>
    %cst_36 = arith.constant 1.000000e+00 : f32
    %227 = vector.broadcast %cst_36 : f32 to vector<8x96xf32>
    %228 = arith.addf %227, %226 : vector<8x96xf32>
    %229 = arith.divf %227, %228 : vector<8x96xf32>
    %230 = vector.extract_strided_slice %223 {offsets = [0, 96], sizes = [8, 32], strides = [1, 1]} : vector<8x128xf32> to vector<8x32xf32>
    %231 = math.tanh %230 : vector<8x32xf32>
    %232 = vector.extract_strided_slice %229 {offsets = [0, 0], sizes = [8, 32], strides = [1, 1]} : vector<8x96xf32> to vector<8x32xf32>
    %233 = vector.extract_strided_slice %229 {offsets = [0, 32], sizes = [8, 32], strides = [1, 1]} : vector<8x96xf32> to vector<8x32xf32>
    %234 = vector.extract_strided_slice %229 {offsets = [0, 64], sizes = [8, 32], strides = [1, 1]} : vector<8x96xf32> to vector<8x32xf32>
    %235 = arith.mulf %233, %194 : vector<8x32xf32>
    %236 = arith.mulf %232, %231 : vector<8x32xf32>
    %237 = arith.addf %235, %236 : vector<8x32xf32>
    %238 = math.tanh %237 : vector<8x32xf32>
    %239 = arith.mulf %234, %238 : vector<8x32xf32>
    %240 = arith.addf %197, %239 : vector<8x32xf32>
    %241 = vector.extract_strided_slice %220 {offsets = [0, 128], sizes = [8, 128], strides = [1, 1]} : vector<8x256xf32> to vector<8x128xf32>
    %cst_37 = arith.constant dense<0.000000e+00> : vector<8x128xf32>
    %242 = tpu.matmul %216, %1, %cst_37 {dimension_numbers = #tpu.dot_dimension_numbers<[1], [0], [0], [1], [0, 0, 1, 1], [], []>} : vector<8x32xf32>, vector<32x128xf32>, vector<8x128xf32> -> vector<8x128xf32>
    %243 = arith.addf %242, %241 : vector<8x128xf32>
    %244 = vector.extract_strided_slice %243 {offsets = [0, 0], sizes = [8, 96], strides = [1, 1]} : vector<8x128xf32> to vector<8x96xf32>
    %245 = arith.negf %244 : vector<8x96xf32>
    %246 = math.exp %245 : vector<8x96xf32>
    %cst_38 = arith.constant 1.000000e+00 : f32
    %247 = vector.broadcast %cst_38 : f32 to vector<8x96xf32>
    %248 = arith.addf %247, %246 : vector<8x96xf32>
    %249 = arith.divf %247, %248 : vector<8x96xf32>
    %250 = vector.extract_strided_slice %243 {offsets = [0, 96], sizes = [8, 32], strides = [1, 1]} : vector<8x128xf32> to vector<8x32xf32>
    %251 = math.tanh %250 : vector<8x32xf32>
    %252 = vector.extract_strided_slice %249 {offsets = [0, 0], sizes = [8, 32], strides = [1, 1]} : vector<8x96xf32> to vector<8x32xf32>
    %253 = vector.extract_strided_slice %249 {offsets = [0, 32], sizes = [8, 32], strides = [1, 1]} : vector<8x96xf32> to vector<8x32xf32>
    %254 = vector.extract_strided_slice %249 {offsets = [0, 64], sizes = [8, 32], strides = [1, 1]} : vector<8x96xf32> to vector<8x32xf32>
    %255 = arith.mulf %253, %214 : vector<8x32xf32>
    %256 = arith.mulf %252, %251 : vector<8x32xf32>
    %257 = arith.addf %255, %256 : vector<8x32xf32>
    %258 = math.tanh %257 : vector<8x32xf32>
    %259 = arith.mulf %254, %258 : vector<8x32xf32>
    %260 = arith.addf %217, %259 : vector<8x32xf32>
    %c6_i32 = arith.constant 6 : i32
    %261 = arith.index_cast %c6_i32 : i32 to index
    %c0_39 = arith.constant 0 : index
    %c0_40 = arith.constant 0 : index
    %262 = vector.load %arg1[%261, %c0_39, %c0_40] : memref<8x8x256xf32, #tpu.memory_space<vmem>>, vector<1x8x256xf32>
    %263 = vector.shape_cast %262 : vector<1x8x256xf32> to vector<8x256xf32>
    %264 = vector.extract_strided_slice %263 {offsets = [0, 0], sizes = [8, 128], strides = [1, 1]} : vector<8x256xf32> to vector<8x128xf32>
    %cst_41 = arith.constant dense<0.000000e+00> : vector<8x128xf32>
    %265 = tpu.matmul %239, %0, %cst_41 {dimension_numbers = #tpu.dot_dimension_numbers<[1], [0], [0], [1], [0, 0, 1, 1], [], []>} : vector<8x32xf32>, vector<32x128xf32>, vector<8x128xf32> -> vector<8x128xf32>
    %266 = arith.addf %265, %264 : vector<8x128xf32>
    %267 = vector.extract_strided_slice %266 {offsets = [0, 0], sizes = [8, 96], strides = [1, 1]} : vector<8x128xf32> to vector<8x96xf32>
    %268 = arith.negf %267 : vector<8x96xf32>
    %269 = math.exp %268 : vector<8x96xf32>
    %cst_42 = arith.constant 1.000000e+00 : f32
    %270 = vector.broadcast %cst_42 : f32 to vector<8x96xf32>
    %271 = arith.addf %270, %269 : vector<8x96xf32>
    %272 = arith.divf %270, %271 : vector<8x96xf32>
    %273 = vector.extract_strided_slice %266 {offsets = [0, 96], sizes = [8, 32], strides = [1, 1]} : vector<8x128xf32> to vector<8x32xf32>
    %274 = math.tanh %273 : vector<8x32xf32>
    %275 = vector.extract_strided_slice %272 {offsets = [0, 0], sizes = [8, 32], strides = [1, 1]} : vector<8x96xf32> to vector<8x32xf32>
    %276 = vector.extract_strided_slice %272 {offsets = [0, 32], sizes = [8, 32], strides = [1, 1]} : vector<8x96xf32> to vector<8x32xf32>
    %277 = vector.extract_strided_slice %272 {offsets = [0, 64], sizes = [8, 32], strides = [1, 1]} : vector<8x96xf32> to vector<8x32xf32>
    %278 = arith.mulf %276, %237 : vector<8x32xf32>
    %279 = arith.mulf %275, %274 : vector<8x32xf32>
    %280 = arith.addf %278, %279 : vector<8x32xf32>
    %281 = math.tanh %280 : vector<8x32xf32>
    %282 = arith.mulf %277, %281 : vector<8x32xf32>
    %283 = arith.addf %240, %282 : vector<8x32xf32>
    %284 = vector.extract_strided_slice %263 {offsets = [0, 128], sizes = [8, 128], strides = [1, 1]} : vector<8x256xf32> to vector<8x128xf32>
    %cst_43 = arith.constant dense<0.000000e+00> : vector<8x128xf32>
    %285 = tpu.matmul %259, %1, %cst_43 {dimension_numbers = #tpu.dot_dimension_numbers<[1], [0], [0], [1], [0, 0, 1, 1], [], []>} : vector<8x32xf32>, vector<32x128xf32>, vector<8x128xf32> -> vector<8x128xf32>
    %286 = arith.addf %285, %284 : vector<8x128xf32>
    %287 = vector.extract_strided_slice %286 {offsets = [0, 0], sizes = [8, 96], strides = [1, 1]} : vector<8x128xf32> to vector<8x96xf32>
    %288 = arith.negf %287 : vector<8x96xf32>
    %289 = math.exp %288 : vector<8x96xf32>
    %cst_44 = arith.constant 1.000000e+00 : f32
    %290 = vector.broadcast %cst_44 : f32 to vector<8x96xf32>
    %291 = arith.addf %290, %289 : vector<8x96xf32>
    %292 = arith.divf %290, %291 : vector<8x96xf32>
    %293 = vector.extract_strided_slice %286 {offsets = [0, 96], sizes = [8, 32], strides = [1, 1]} : vector<8x128xf32> to vector<8x32xf32>
    %294 = math.tanh %293 : vector<8x32xf32>
    %295 = vector.extract_strided_slice %292 {offsets = [0, 0], sizes = [8, 32], strides = [1, 1]} : vector<8x96xf32> to vector<8x32xf32>
    %296 = vector.extract_strided_slice %292 {offsets = [0, 32], sizes = [8, 32], strides = [1, 1]} : vector<8x96xf32> to vector<8x32xf32>
    %297 = vector.extract_strided_slice %292 {offsets = [0, 64], sizes = [8, 32], strides = [1, 1]} : vector<8x96xf32> to vector<8x32xf32>
    %298 = arith.mulf %296, %257 : vector<8x32xf32>
    %299 = arith.mulf %295, %294 : vector<8x32xf32>
    %300 = arith.addf %298, %299 : vector<8x32xf32>
    %301 = math.tanh %300 : vector<8x32xf32>
    %302 = arith.mulf %297, %301 : vector<8x32xf32>
    %303 = arith.addf %260, %302 : vector<8x32xf32>
    %c7_i32 = arith.constant 7 : i32
    %304 = arith.index_cast %c7_i32 : i32 to index
    %c0_45 = arith.constant 0 : index
    %c0_46 = arith.constant 0 : index
    %305 = vector.load %arg1[%304, %c0_45, %c0_46] : memref<8x8x256xf32, #tpu.memory_space<vmem>>, vector<1x8x256xf32>
    %306 = vector.shape_cast %305 : vector<1x8x256xf32> to vector<8x256xf32>
    %307 = vector.extract_strided_slice %306 {offsets = [0, 0], sizes = [8, 128], strides = [1, 1]} : vector<8x256xf32> to vector<8x128xf32>
    %cst_47 = arith.constant dense<0.000000e+00> : vector<8x128xf32>
    %308 = tpu.matmul %282, %0, %cst_47 {dimension_numbers = #tpu.dot_dimension_numbers<[1], [0], [0], [1], [0, 0, 1, 1], [], []>} : vector<8x32xf32>, vector<32x128xf32>, vector<8x128xf32> -> vector<8x128xf32>
    %309 = arith.addf %308, %307 : vector<8x128xf32>
    %310 = vector.extract_strided_slice %309 {offsets = [0, 0], sizes = [8, 96], strides = [1, 1]} : vector<8x128xf32> to vector<8x96xf32>
    %311 = arith.negf %310 : vector<8x96xf32>
    %312 = math.exp %311 : vector<8x96xf32>
    %cst_48 = arith.constant 1.000000e+00 : f32
    %313 = vector.broadcast %cst_48 : f32 to vector<8x96xf32>
    %314 = arith.addf %313, %312 : vector<8x96xf32>
    %315 = arith.divf %313, %314 : vector<8x96xf32>
    %316 = vector.extract_strided_slice %309 {offsets = [0, 96], sizes = [8, 32], strides = [1, 1]} : vector<8x128xf32> to vector<8x32xf32>
    %317 = math.tanh %316 : vector<8x32xf32>
    %318 = vector.extract_strided_slice %315 {offsets = [0, 0], sizes = [8, 32], strides = [1, 1]} : vector<8x96xf32> to vector<8x32xf32>
    %319 = vector.extract_strided_slice %315 {offsets = [0, 32], sizes = [8, 32], strides = [1, 1]} : vector<8x96xf32> to vector<8x32xf32>
    %320 = vector.extract_strided_slice %315 {offsets = [0, 64], sizes = [8, 32], strides = [1, 1]} : vector<8x96xf32> to vector<8x32xf32>
    %321 = arith.mulf %319, %280 : vector<8x32xf32>
    %322 = arith.mulf %318, %317 : vector<8x32xf32>
    %323 = arith.addf %321, %322 : vector<8x32xf32>
    %324 = math.tanh %323 : vector<8x32xf32>
    %325 = arith.mulf %320, %324 : vector<8x32xf32>
    %326 = arith.addf %283, %325 : vector<8x32xf32>
    %327 = vector.extract_strided_slice %306 {offsets = [0, 128], sizes = [8, 128], strides = [1, 1]} : vector<8x256xf32> to vector<8x128xf32>
    %cst_49 = arith.constant dense<0.000000e+00> : vector<8x128xf32>
    %328 = tpu.matmul %302, %1, %cst_49 {dimension_numbers = #tpu.dot_dimension_numbers<[1], [0], [0], [1], [0, 0, 1, 1], [], []>} : vector<8x32xf32>, vector<32x128xf32>, vector<8x128xf32> -> vector<8x128xf32>
    %329 = arith.addf %328, %327 : vector<8x128xf32>
    %330 = vector.extract_strided_slice %329 {offsets = [0, 0], sizes = [8, 96], strides = [1, 1]} : vector<8x128xf32> to vector<8x96xf32>
    %331 = arith.negf %330 : vector<8x96xf32>
    %332 = math.exp %331 : vector<8x96xf32>
    %cst_50 = arith.constant 1.000000e+00 : f32
    %333 = vector.broadcast %cst_50 : f32 to vector<8x96xf32>
    %334 = arith.addf %333, %332 : vector<8x96xf32>
    %335 = arith.divf %333, %334 : vector<8x96xf32>
    %336 = vector.extract_strided_slice %329 {offsets = [0, 96], sizes = [8, 32], strides = [1, 1]} : vector<8x128xf32> to vector<8x32xf32>
    %337 = math.tanh %336 : vector<8x32xf32>
    %338 = vector.extract_strided_slice %335 {offsets = [0, 0], sizes = [8, 32], strides = [1, 1]} : vector<8x96xf32> to vector<8x32xf32>
    %339 = vector.extract_strided_slice %335 {offsets = [0, 32], sizes = [8, 32], strides = [1, 1]} : vector<8x96xf32> to vector<8x32xf32>
    %340 = vector.extract_strided_slice %335 {offsets = [0, 64], sizes = [8, 32], strides = [1, 1]} : vector<8x96xf32> to vector<8x32xf32>
    %341 = arith.mulf %339, %300 : vector<8x32xf32>
    %342 = arith.mulf %338, %337 : vector<8x32xf32>
    %343 = arith.addf %341, %342 : vector<8x32xf32>
    %344 = math.tanh %343 : vector<8x32xf32>
    %345 = arith.mulf %340, %344 : vector<8x32xf32>
    %346 = arith.addf %303, %345 : vector<8x32xf32>
    %c8_i32 = arith.constant 8 : i32
    %347 = tpu.concatenate %326, %346 in 1 : vector<8x32xf32>, vector<8x32xf32> -> vector<8x64xf32>
    %cst_51 = arith.constant 1.250000e-01 : f32
    %348 = vector.broadcast %cst_51 : f32 to vector<8x64xf32>
    %349 = arith.mulf %347, %348 : vector<8x64xf32>
    %c0_52 = arith.constant 0 : index
    %c0_53 = arith.constant 0 : index
    %350 = vector.load %arg4[%c0_52, %c0_53] : memref<8x64xf32, #tpu.memory_space<vmem>>, vector<8x64xf32>
    tpu.vector_store %arg4[%c0_52, %c0_53], %349 {strides = array<i32>} : memref<8x64xf32, #tpu.memory_space<vmem>>, vector<8x64xf32>,
    return
  }
  func.func @transform_0(%arg0: i32) -> (i32, i32, i32) {
    %c0_i32 = arith.constant 0 : i32
    %c0_i32_0 = arith.constant 0 : i32
    %c0_i32_1 = arith.constant 0 : i32
    return %c0_i32, %arg0, %c0_i32_0 : i32, i32, i32
  }
  func.func @transform_1(%arg0: i32) -> (i32, i32) {
    %c0_i32 = arith.constant 0 : i32
    %c0_i32_0 = arith.constant 0 : i32
    %c0_i32_1 = arith.constant 0 : i32
    return %c0_i32, %c0_i32_0 : i32, i32
  }
  func.func @transform_2(%arg0: i32) -> (i32, i32) {
    %c0_i32 = arith.constant 0 : i32
    %c0_i32_0 = arith.constant 0 : i32
    %c0_i32_1 = arith.constant 0 : i32
    return %c0_i32, %c0_i32_0 : i32, i32
  }
  func.func @transform_3(%arg0: i32) -> (i32, i32) {
    %c0_i32 = arith.constant 0 : i32
    %c0_i32_0 = arith.constant 0 : i32
    return %arg0, %c0_i32 : i32, i32
  }
}

</mosaic_0001>

<llo_original>
// kernel: tpu_custom_call.1
$region0: #{tpu_custom_call.1}
  #allocation0 [shape = 'u32[]', space=smem, size = 0x4, offset = 0x4, fixed_abs, tag = 'smem constant byte address 0x4 - core index']
  #allocation1 [shape = 'u32[144,128]{1,0:T(1,128)}', space=vmem, size = 0x12000, scoped, tag = 'internal scratch']
  %s0 = inlined_call_operand.hbm [shape: f32[8,8,256], index: 0, kind: input, shape index: {}]
  %s1 = inlined_call_operand.hbm [shape: f32[32,128], index: 1, kind: input, shape index: {}]
  %s2 = inlined_call_operand.hbm [shape: f32[32,128], index: 2, kind: input, shape index: {}]
  %s3 = inlined_call_operand.hbm [shape: f32[8,64], index: 3, kind: output, shape index: {}]
  %s4 = sld [smem:[#allocation0]]
  $region34: #{tpu_custom_call.1} parent=0
    _
  %s6 = ssub.s32 1, %s4
  %s7 = scalar_select 0, %s6, %s4
  $region1: #{tpu_custom_call.1} parent=0
    #allocation2 [shape = 'u8[65536]{0}', space=vmem, size = 0x10000, scoped, tag = 'input window, operand 0, single buffered']
    #allocation3 [shape = 's32[1]{0}', space=sflag, size = 0x4, scoped, tag = 'scoped memory for tpu_custom_call.1']
    #allocation4 [shape = 's32[1]{0}', space=sflag, size = 0x4, scoped, tag = 'scoped memory for tpu_custom_call.1']
    #allocation5 [shape = 'u8[16384]{0}', space=vmem, size = 0x4000, scoped, tag = 'input window, operand 1, single buffered']
    #allocation6 [shape = 's32[1]{0}', space=sflag, size = 0x4, scoped, tag = 'scoped memory for tpu_custom_call.1']
    #allocation7 [shape = 'u8[16384]{0}', space=vmem, size = 0x4000, scoped, tag = 'input window, operand 2, single buffered']
    #allocation8 [shape = 'u8[4096]{0}', space=vmem, size = 0x1000, scoped, tag = 'output window, operand 0, single buffered']
    %8 = vsyncpa [#allocation3], 0
    %9 = vsyncpa [#allocation6], 0
    %10 = vsyncpa [#allocation4], 0
    // Predicated region
    $region2: #{tpu_custom_call.1} parent=1 // pred_check
      _
    $region3: #{tpu_custom_call.1} parent=1 // pred_check_branch
      %12 = sbr.rel (0) target = $region5
    $region4: #{tpu_custom_call.1} parent=1 // pred_region
      %s14 = ssub.s32 2048, 2048
      %15 = vsyncadd [#allocation3], %s14
      %s16 = sshll.u32 [#allocation2], 4
      %s17 = int_to_ptr.vmem [resolvable:$true] %s16
      %22 = dma.hbm_to_vmem [thread:$0]  %s0, 2048, %s17, [#allocation3], 256, 256, 16
    $region5: #{tpu_custom_call.1} parent=1 // pred_fallthru
      _
    // Predicated region
    $region6: #{tpu_custom_call.1} parent=1 // pred_check
      _
    $region7: #{tpu_custom_call.1} parent=1 // pred_check_branch
      %24 = sbr.rel (0) target = $region9
    $region8: #{tpu_custom_call.1} parent=1 // pred_region
      %s26 = ssub.s32 512, 512
      %27 = vsyncadd [#allocation6], %s26
      %s28 = sshll.u32 [#allocation5], 4
      %s29 = int_to_ptr.vmem [resolvable:$true] %s28
      %34 = dma.hbm_to_vmem [thread:$0]  %s1, 512, %s29, [#allocation6], 128, 128, 8
    $region9: #{tpu_custom_call.1} parent=1 // pred_fallthru
      _
    // Predicated region
    $region10: #{tpu_custom_call.1} parent=1 // pred_check
      _
    $region11: #{tpu_custom_call.1} parent=1 // pred_check_branch
      %36 = sbr.rel (0) target = $region13
    $region12: #{tpu_custom_call.1} parent=1 // pred_region
      %s38 = ssub.s32 512, 512
      %39 = vsyncadd [#allocation6], %s38
      %s40 = sshll.u32 [#allocation7], 4
      %s41 = int_to_ptr.vmem [resolvable:$true] %s40
      %46 = dma.hbm_to_vmem [thread:$0]  %s2, 512, %s41, [#allocation6], 128, 128, 8
    $region13: #{tpu_custom_call.1} parent=1 // pred_fallthru
      _
    // Predicated region
    $region14: #{tpu_custom_call.1} parent=1 // pred_check
      _
    $region15: #{tpu_custom_call.1} parent=1 // pred_check_branch
      %48 = sbr.rel (0) target = $region17
    $region16: #{tpu_custom_call.1} parent=1 // pred_region
      %49 = dma.done [#allocation3], 2048
    $region17: #{tpu_custom_call.1} parent=1 // pred_fallthru
      _
    // Predicated region
    $region18: #{tpu_custom_call.1} parent=1 // pred_check
      _
    $region19: #{tpu_custom_call.1} parent=1 // pred_check_branch
      %51 = sbr.rel (0) target = $region21
    $region20: #{tpu_custom_call.1} parent=1 // pred_region
      %52 = dma.done [#allocation6], 512
    $region21: #{tpu_custom_call.1} parent=1 // pred_fallthru
      _
    // Predicated region
    $region22: #{tpu_custom_call.1} parent=1 // pred_check
      _
    $region23: #{tpu_custom_call.1} parent=1 // pred_check_branch
      %54 = sbr.rel (0) target = $region25
    $region24: #{tpu_custom_call.1} parent=1 // pred_region
      %55 = dma.done [#allocation6], 512
    $region25: #{tpu_custom_call.1} parent=1 // pred_fallthru
      _
    %v56 = vld [vmem:[#allocation5] sm:$0xff]
    %v57 = vld [vmem:[#allocation5 + $0x8] sm:$0xff]
    %v58 = vld [vmem:[#allocation5 + $0x10] sm:$0xff]
    %v59 = vld [vmem:[#allocation5 + $0x18] sm:$0xff]
    %v60 = vld [vmem:[#allocation7] sm:$0xff]
    %v61 = vld [vmem:[#allocation7 + $0x8] sm:$0xff]
    %v62 = vld [vmem:[#allocation7 + $0x10] sm:$0xff]
    %v63 = vld [vmem:[#allocation7 + $0x18] sm:$0xff]
    %v64 = vld [vmem:[#allocation2] sm:$0xff]
    %v65 = vld [vmem:[#allocation2 + $0x8] sm:$0xff]
    %vm66 = vcmask 261120
    %v68 = vsel %vm66, 0.0, 0
    %70 = vmatprep.subr.mxu0 0.0
    %71 = vmatpush1.msra.mxu0 %v56
    %72 = vmatprep.subr.mxu0 0.0
    %73 = vmatpush1.msra.mxu0 %v57
    %74 = vmatprep.subr.mxu0 0.0
    %75 = vmatpush1.msra.mxu0 %v58
    %76 = vmatprep.subr.mxu0 0.0
    %77 = vmatpush1.msra.mxu0 %v59
    %78 = vmatprep.subr.mxu0 0.0
    %79 = vmatpush1.msra.mxu0 0.0
    %80 = vmatprep.subr.mxu0 0.0
    %81 = vmatpush1.msra.mxu0 0.0
    %82 = vmatprep.subr.mxu0 0.0
    %83 = vmatpush1.msra.mxu0 0.0
    %84 = vmatprep.subr.mxu0 0.0
    %85 = vmatpush1.msra.mxu0 0.0
    %86 = vmatprep.subr.mxu0 0.0
    %87 = vmatpush1.msra.mxu0 0.0
    %88 = vmatprep.subr.mxu0 0.0
    %89 = vmatpush1.msra.mxu0 0.0
    %90 = vmatprep.subr.mxu0 0.0
    %91 = vmatpush1.msra.mxu0 0.0
    %92 = vmatprep.subr.mxu0 0.0
    %93 = vmatpush1.msra.mxu0 0.0
    %94 = vmatprep.subr.mxu0 0.0
    %95 = vmatpush1.msra.mxu0 0.0
    %96 = vmatprep.subr.mxu0 0.0
    %97 = vmatpush1.msra.mxu0 0.0
    %98 = vmatprep.subr.mxu0 0.0
    %99 = vmatpush1.msra.mxu0 0.0
    %100 = vmatprep.subr.mxu0 0.0
    %101 = vmatpush1.msra.mxu0 0.0
    %102 = vmatprep.subr.mxu0 0.0
    %103 = vmatpush1.msra.mxu0 0.0
    %104 = vmatprep.subr.mxu0 0.0
    %105 = vmatpush1.msra.mxu0 0.0
    %106 = vmatprep.subr.mxu0 0.0
    %107 = vmatpush1.msra.mxu0 0.0
    %108 = vmatprep.subr.mxu0 0.0
    %109 = vmatpush1.msra.mxu0 0.0
    %110 = vmatprep.subr.mxu0 0.0
    %111 = vmatpush1.msra.mxu0 0.0
    %112 = vmatprep.subr.mxu0 0.0
    %113 = vmatpush1.msra.mxu0 0.0
    %114 = vmatprep.subr.mxu0 0.0
    %115 = vmatpush1.msra.mxu0 0.0
    %116 = vmatprep.subr.mxu0 0.0
    %117 = vmatpush1.msra.mxu0 0.0
    %118 = vmatprep.subr.mxu0 0.0
    %119 = vmatpush1.msra.mxu0 0.0
    %120 = vmatprep.subr.mxu0 0.0
    %121 = vmatpush1.msra.mxu0 0.0
    %122 = vmatprep.subr.mxu0 0.0
    %123 = vmatpush1.msra.mxu0 0.0
    %124 = vmatprep.subr.mxu0 0.0
    %125 = vmatpush1.msra.mxu0 0.0
    %126 = vmatprep.subr.mxu0 0.0
    %127 = vmatpush1.msra.mxu0 0.0
    %128 = vmatprep.subr.mxu0 0.0
    %129 = vmatpush1.msra.mxu0 0.0
    %130 = vmatprep.subr.mxu0 0.0
    %131 = vmatpush1.msra.mxu0 0.0
    %132 = vmatprep.subr.mxu0 0.0
    %133 = vmatpush1.msra.mxu0 0.0
    %134 = vmatprep.mubr.f32.mxu0 0.0
    %135 = vmatmul.mubr.f32.gmra.mrb[0].mxu0 %v68
    %v136 = vpop.f32.mrb[0].mxu0
    %v137 = vadd.f32 %v64, %v136
    %v138 = vpop.f32.mrb[0].mxu0
    %139 = vdwg.mxu0
    %v140 = vxor.u32 %v137, 2147483648
    %v141 = vmul.f32 %v140, 1.442695
    %v142 = vpow.pop %v141
    %v143 = vadd.f32 %v142, 1.0
    %v144 = vrcp.pop %v143
    %v145 = vmul.f32 1.0, %v144
    %v146 = vtanh.pop %v137
    %v147 = vmul.f32 %v145, 0.0
    %149 = vrot.lane.b32.xlu0 %v146, 32
    %v150 = vpop.permute.xlu0 %149
    %v152 = vmul.f32 %v145, %v150
    %154 = vrot.lane.b32.xlu0 %v152, 32
    %v155 = vpop.permute.xlu0 %154
    %v157 = vadd.f32 %v147, %v155
    %v158 = vtanh.pop %v157
    %160 = vrot.lane.b32.xlu0 %v158, 32
    %v161 = vpop.permute.xlu0 %160
    %v163 = vmul.f32 %v145, %v161
    %v164 = vadd.f32 %v163, 0.0
    %165 = vmatprep.subr.mxu0 0.0
    %166 = vmatpush1.msra.mxu0 %v60
    %167 = vmatprep.subr.mxu0 0.0
    %168 = vmatpush1.msra.mxu0 %v61
    %169 = vmatprep.subr.mxu0 0.0
    %170 = vmatpush1.msra.mxu0 %v62
    %171 = vmatprep.subr.mxu0 0.0
    %172 = vmatpush1.msra.mxu0 %v63
    %173 = vmatprep.subr.mxu0 0.0
    %174 = vmatpush1.msra.mxu0 0.0
    %175 = vmatprep.subr.mxu0 0.0
    %176 = vmatpush1.msra.mxu0 0.0
    %177 = vmatprep.subr.mxu0 0.0
    %178 = vmatpush1.msra.mxu0 0.0
    %179 = vmatprep.subr.mxu0 0.0
    %180 = vmatpush1.msra.mxu0 0.0
    %181 = vmatprep.subr.mxu0 0.0
    %182 = vmatpush1.msra.mxu0 0.0
    %183 = vmatprep.subr.mxu0 0.0
    %184 = vmatpush1.msra.mxu0 0.0
    %185 = vmatprep.subr.mxu0 0.0
    %186 = vmatpush1.msra.mxu0 0.0
    %187 = vmatprep.subr.mxu0 0.0
    %188 = vmatpush1.msra.mxu0 0.0
    %189 = vmatprep.subr.mxu0 0.0
    %190 = vmatpush1.msra.mxu0 0.0
    %191 = vmatprep.subr.mxu0 0.0
    %192 = vmatpush1.msra.mxu0 0.0
    %193 = vmatprep.subr.mxu0 0.0
    %194 = vmatpush1.msra.mxu0 0.0
    %195 = vmatprep.subr.mxu0 0.0
    %196 = vmatpush1.msra.mxu0 0.0
    %197 = vmatprep.subr.mxu0 0.0
    %198 = vmatpush1.msra.mxu0 0.0
    %199 = vmatprep.subr.mxu0 0.0
    %200 = vmatpush1.msra.mxu0 0.0
    %201 = vmatprep.subr.mxu0 0.0
    %202 = vmatpush1.msra.mxu0 0.0
    %203 = vmatprep.subr.mxu0 0.0
    %204 = vmatpush1.msra.mxu0 0.0
    %205 = vmatprep.subr.mxu0 0.0
    %206 = vmatpush1.msra.mxu0 0.0
    %207 = vmatprep.subr.mxu0 0.0
    %208 = vmatpush1.msra.mxu0 0.0
    %209 = vmatprep.subr.mxu0 0.0
    %210 = vmatpush1.msra.mxu0 0.0
    %211 = vmatprep.subr.mxu0 0.0
    %212 = vmatpush1.msra.mxu0 0.0
    %213 = vmatprep.subr.mxu0 0.0
    %214 = vmatpush1.msra.mxu0 0.0
    %215 = vmatprep.subr.mxu0 0.0
    %216 = vmatpush1.msra.mxu0 0.0
    %217 = vmatprep.subr.mxu0 0.0
    %218 = vmatpush1.msra.mxu0 0.0
    %219 = vmatprep.subr.mxu0 0.0
    %220 = vmatpush1.msra.mxu0 0.0
    %221 = vmatprep.subr.mxu0 0.0
    %222 = vmatpush1.msra.mxu0 0.0
    %223 = vmatprep.subr.mxu0 0.0
    %224 = vmatpush1.msra.mxu0 0.0
    %225 = vmatprep.subr.mxu0 0.0
    %226 = vmatpush1.msra.mxu0 0.0
    %227 = vmatprep.subr.mxu0 0.0
    %228 = vmatpush1.msra.mxu0 0.0
    %229 = vmatprep.mubr.f32.mxu0 0.0
    %230 = vmatmul.mubr.f32.gmra.mrb[0].mxu0 %v68
    %v231 = vpop.f32.mrb[0].mxu0
    %v232 = vadd.f32 %v65, %v231
    %v233 = vpop.f32.mrb[0].mxu0
    %234 = vdwg.mxu0
    %v235 = vxor.u32 %v232, 2147483648
    %v236 = vmul.f32 %v235, 1.442695
    %v237 = vpow.pop %v236
    %v238 = vadd.f32 %v237, 1.0
    %v239 = vrcp.pop %v238
    %v240 = vmul.f32 1.0, %v239
    %v241 = vtanh.pop %v232
    %v242 = vmul.f32 %v240, 0.0
    %244 = vrot.lane.b32.xlu0 %v241, 32
    %v245 = vpop.permute.xlu0 %244
    %v247 = vmul.f32 %v240, %v245
    %249 = vrot.lane.b32.xlu0 %v247, 32
    %v250 = vpop.permute.xlu0 %249
    %v252 = vadd.f32 %v242, %v250
    %v253 = vtanh.pop %v252
    %255 = vrot.lane.b32.xlu0 %v253, 32
    %v256 = vpop.permute.xlu0 %255
    %v258 = vmul.f32 %v240, %v256
    %v259 = vadd.f32 %v258, 0.0
    %s260 = scalar_lea.vmem [#allocation2], 16
    %v261 = vld [vmem:[%s260] sm:$0xff]
    %v262 = vld [vmem:[%s260 + $0x8] sm:$0xff]
    %264 = vrot.lane.b32.xlu0 %v163, 64
    %v265 = vpop.permute.xlu0 %264
    %v266 = vsel %vm66, %v265, 0
    %268 = vmatprep.subr.mxu0 0.0
    %269 = vmatpush1.msra.mxu0 %v56
    %270 = vmatprep.subr.mxu0 0.0
    %271 = vmatpush1.msra.mxu0 %v57
    %272 = vmatprep.subr.mxu0 0.0
    %273 = vmatpush1.msra.mxu0 %v58
    %274 = vmatprep.subr.mxu0 0.0
    %275 = vmatpush1.msra.mxu0 %v59
    %276 = vmatprep.subr.mxu0 0.0
    %277 = vmatpush1.msra.mxu0 0.0
    %278 = vmatprep.subr.mxu0 0.0
    %279 = vmatpush1.msra.mxu0 0.0
    %280 = vmatprep.subr.mxu0 0.0
    %281 = vmatpush1.msra.mxu0 0.0
    %282 = vmatprep.subr.mxu0 0.0
    %283 = vmatpush1.msra.mxu0 0.0
    %284 = vmatprep.subr.mxu0 0.0
    %285 = vmatpush1.msra.mxu0 0.0
    %286 = vmatprep.subr.mxu0 0.0
    %287 = vmatpush1.msra.mxu0 0.0
    %288 = vmatprep.subr.mxu0 0.0
    %289 = vmatpush1.msra.mxu0 0.0
    %290 = vmatprep.subr.mxu0 0.0
    %291 = vmatpush1.msra.mxu0 0.0
    %292 = vmatprep.subr.mxu0 0.0
    %293 = vmatpush1.msra.mxu0 0.0
    %294 = vmatprep.subr.mxu0 0.0
    %295 = vmatpush1.msra.mxu0 0.0
    %296 = vmatprep.subr.mxu0 0.0
    %297 = vmatpush1.msra.mxu0 0.0
    %298 = vmatprep.subr.mxu0 0.0
    %299 = vmatpush1.msra.mxu0 0.0
    %300 = vmatprep.subr.mxu0 0.0
    %301 = vmatpush1.msra.mxu0 0.0
    %302 = vmatprep.subr.mxu0 0.0
    %303 = vmatpush1.msra.mxu0 0.0
    %304 = vmatprep.subr.mxu0 0.0
    %305 = vmatpush1.msra.mxu0 0.0
    %306 = vmatprep.subr.mxu0 0.0
    %307 = vmatpush1.msra.mxu0 0.0
    %308 = vmatprep.subr.mxu0 0.0
    %309 = vmatpush1.msra.mxu0 0.0
    %310 = vmatprep.subr.mxu0 0.0
    %311 = vmatpush1.msra.mxu0 0.0
    %312 = vmatprep.subr.mxu0 0.0
    %313 = vmatpush1.msra.mxu0 0.0
    %314 = vmatprep.subr.mxu0 0.0
    %315 = vmatpush1.msra.mxu0 0.0
    %316 = vmatprep.subr.mxu0 0.0
    %317 = vmatpush1.msra.mxu0 0.0
    %318 = vmatprep.subr.mxu0 0.0
    %319 = vmatpush1.msra.mxu0 0.0
    %320 = vmatprep.subr.mxu0 0.0
    %321 = vmatpush1.msra.mxu0 0.0
    %322 = vmatprep.subr.mxu0 0.0
    %323 = vmatpush1.msra.mxu0 0.0
    %324 = vmatprep.subr.mxu0 0.0
    %325 = vmatpush1.msra.mxu0 0.0
    %326 = vmatprep.subr.mxu0 0.0
    %327 = vmatpush1.msra.mxu0 0.0
    %328 = vmatprep.subr.mxu0 0.0
    %329 = vmatpush1.msra.mxu0 0.0
    %330 = vmatprep.subr.mxu0 0.0
    %331 = vmatpush1.msra.mxu0 0.0
    %332 = vmatprep.mubr.f32.mxu0 0.0
    %333 = vmatmul.mubr.f32.gmra.mrb[0].mxu0 %v266
    %v334 = vpop.f32.mrb[0].mxu0
    %v335 = vadd.f32 %v261, %v334
    %v336 = vpop.f32.mrb[0].mxu0
    %337 = vdwg.mxu0
    %v338 = vxor.u32 %v335, 2147483648
    %v339 = vmul.f32 %v338, 1.442695
    %v340 = vpow.pop %v339
    %v341 = vadd.f32 %v340, 1.0
    %v342 = vrcp.pop %v341
    %v343 = vmul.f32 1.0, %v342
    %v344 = vtanh.pop %v335
    %v345 = vmul.f32 %v343, %v157
    %347 = vrot.lane.b32.xlu0 %v344, 32
    %v348 = vpop.permute.xlu0 %347
    %v350 = vmul.f32 %v343, %v348
    %352 = vrot.lane.b32.xlu0 %v350, 32
    %v353 = vpop.permute.xlu0 %352
    %v355 = vadd.f32 %v345, %v353
    %v356 = vtanh.pop %v355
    %358 = vrot.lane.b32.xlu0 %v356, 32
    %v359 = vpop.permute.xlu0 %358
    %v361 = vmul.f32 %v343, %v359
    %v362 = vadd.f32 %v164, %v361
    %364 = vrot.lane.b32.xlu0 %v258, 64
    %v365 = vpop.permute.xlu0 %364
    %v366 = vsel %vm66, %v365, 0
    %368 = vmatprep.subr.mxu0 0.0
    %369 = vmatpush1.msra.mxu0 %v60
    %370 = vmatprep.subr.mxu0 0.0
    %371 = vmatpush1.msra.mxu0 %v61
    %372 = vmatprep.subr.mxu0 0.0
    %373 = vmatpush1.msra.mxu0 %v62
    %374 = vmatprep.subr.mxu0 0.0
    %375 = vmatpush1.msra.mxu0 %v63
    %376 = vmatprep.subr.mxu0 0.0
    %377 = vmatpush1.msra.mxu0 0.0
    %378 = vmatprep.subr.mxu0 0.0
    %379 = vmatpush1.msra.mxu0 0.0
    %380 = vmatprep.subr.mxu0 0.0
    %381 = vmatpush1.msra.mxu0 0.0
    %382 = vmatprep.subr.mxu0 0.0
    %383 = vmatpush1.msra.mxu0 0.0
    %384 = vmatprep.subr.mxu0 0.0
    %385 = vmatpush1.msra.mxu0 0.0
    %386 = vmatprep.subr.mxu0 0.0
    %387 = vmatpush1.msra.mxu0 0.0
    %388 = vmatprep.subr.mxu0 0.0
    %389 = vmatpush1.msra.mxu0 0.0
    %390 = vmatprep.subr.mxu0 0.0
    %391 = vmatpush1.msra.mxu0 0.0
    %392 = vmatprep.subr.mxu0 0.0
    %393 = vmatpush1.msra.mxu0 0.0
    %394 = vmatprep.subr.mxu0 0.0
    %395 = vmatpush1.msra.mxu0 0.0
    %396 = vmatprep.subr.mxu0 0.0
    %397 = vmatpush1.msra.mxu0 0.0
    %398 = vmatprep.subr.mxu0 0.0
    %399 = vmatpush1.msra.mxu0 0.0
    %400 = vmatprep.subr.mxu0 0.0
    %401 = vmatpush1.msra.mxu0 0.0
    %402 = vmatprep.subr.mxu0 0.0
    %403 = vmatpush1.msra.mxu0 0.0
    %404 = vmatprep.subr.mxu0 0.0
    %405 = vmatpush1.msra.mxu0 0.0
    %406 = vmatprep.subr.mxu0 0.0
    %407 = vmatpush1.msra.mxu0 0.0
    %408 = vmatprep.subr.mxu0 0.0
    %409 = vmatpush1.msra.mxu0 0.0
    %410 = vmatprep.subr.mxu0 0.0
    %411 = vmatpush1.msra.mxu0 0.0
    %412 = vmatprep.subr.mxu0 0.0
    %413 = vmatpush1.msra.mxu0 0.0
    %414 = vmatprep.subr.mxu0 0.0
    %415 = vmatpush1.msra.mxu0 0.0
    %416 = vmatprep.subr.mxu0 0.0
    %417 = vmatpush1.msra.mxu0 0.0
    %418 = vmatprep.subr.mxu0 0.0
    %419 = vmatpush1.msra.mxu0 0.0
    %420 = vmatprep.subr.mxu0 0.0
    %421 = vmatpush1.msra.mxu0 0.0
    %422 = vmatprep.subr.mxu0 0.0
    %423 = vmatpush1.msra.mxu0 0.0
    %424 = vmatprep.subr.mxu0 0.0
    %425 = vmatpush1.msra.mxu0 0.0
    %426 = vmatprep.subr.mxu0 0.0
    %427 = vmatpush1.msra.mxu0 0.0
    %428 = vmatprep.subr.mxu0 0.0
    %429 = vmatpush1.msra.mxu0 0.0
    %430 = vmatprep.subr.mxu0 0.0
    %431 = vmatpush1.msra.mxu0 0.0
    %432 = vmatprep.mubr.f32.mxu0 0.0
    %433 = vmatmul.mubr.f32.gmra.mrb[0].mxu0 %v366
    %v434 = vpop.f32.mrb[0].mxu0
    %v435 = vadd.f32 %v262, %v434
    %v436 = vpop.f32.mrb[0].mxu0
    %437 = vdwg.mxu0
    %v438 = vxor.u32 %v435, 2147483648
    %v439 = vmul.f32 %v438, 1.442695
    %v440 = vpow.pop %v439
    %v441 = vadd.f32 %v440, 1.0
    %v442 = vrcp.pop %v441
    %v443 = vmul.f32 1.0, %v442
    %v444 = vtanh.pop %v435
    %v445 = vmul.f32 %v443, %v252
    %447 = vrot.lane.b32.xlu0 %v444, 32
    %v448 = vpop.permute.xlu0 %447
    %v450 = vmul.f32 %v443, %v448
    %452 = vrot.lane.b32.xlu0 %v450, 32
    %v453 = vpop.permute.xlu0 %452
    %v455 = vadd.f32 %v445, %v453
    %v456 = vtanh.pop %v455
    %458 = vrot.lane.b32.xlu0 %v456, 32
    %v459 = vpop.permute.xlu0 %458
    %v461 = vmul.f32 %v443, %v459
    %v462 = vadd.f32 %v259, %v461
    %s463 = scalar_lea.vmem [#allocation2], 32
    %v464 = vld [vmem:[%s463] sm:$0xff]
    %v465 = vld [vmem:[%s463 + $0x8] sm:$0xff]
    %467 = vrot.lane.b32.xlu0 %v361, 64
    %v468 = vpop.permute.xlu0 %467
    %v469 = vsel %vm66, %v468, 0
    %471 = vmatprep.subr.mxu0 0.0
    %472 = vmatpush1.msra.mxu0 %v56
    %473 = vmatprep.subr.mxu0 0.0
    %474 = vmatpush1.msra.mxu0 %v57
    %475 = vmatprep.subr.mxu0 0.0
    %476 = vmatpush1.msra.mxu0 %v58
    %477 = vmatprep.subr.mxu0 0.0
    %478 = vmatpush1.msra.mxu0 %v59
    %479 = vmatprep.subr.mxu0 0.0
    %480 = vmatpush1.msra.mxu0 0.0
    %481 = vmatprep.subr.mxu0 0.0
    %482 = vmatpush1.msra.mxu0 0.0
    %483 = vmatprep.subr.mxu0 0.0
    %484 = vmatpush1.msra.mxu0 0.0
    %485 = vmatprep.subr.mxu0 0.0
    %486 = vmatpush1.msra.mxu0 0.0
    %487 = vmatprep.subr.mxu0 0.0
    %488 = vmatpush1.msra.mxu0 0.0
    %489 = vmatprep.subr.mxu0 0.0
    %490 = vmatpush1.msra.mxu0 0.0
    %491 = vmatprep.subr.mxu0 0.0
    %492 = vmatpush1.msra.mxu0 0.0
    %493 = vmatprep.subr.mxu0 0.0
    %494 = vmatpush1.msra.mxu0 0.0
    %495 = vmatprep.subr.mxu0 0.0
    %496 = vmatpush1.msra.mxu0 0.0
    %497 = vmatprep.subr.mxu0 0.0
    %498 = vmatpush1.msra.mxu0 0.0
    %499 = vmatprep.subr.mxu0 0.0
    %500 = vmatpush1.msra.mxu0 0.0
    %501 = vmatprep.subr.mxu0 0.0
    %502 = vmatpush1.msra.mxu0 0.0
    %503 = vmatprep.subr.mxu0 0.0
    %504 = vmatpush1.msra.mxu0 0.0
    %505 = vmatprep.subr.mxu0 0.0
    %506 = vmatpush1.msra.mxu0 0.0
    %507 = vmatprep.subr.mxu0 0.0
    %508 = vmatpush1.msra.mxu0 0.0
    %509 = vmatprep.subr.mxu0 0.0
    %510 = vmatpush1.msra.mxu0 0.0
    %511 = vmatprep.subr.mxu0 0.0
    %512 = vmatpush1.msra.mxu0 0.0
    %513 = vmatprep.subr.mxu0 0.0
    %514 = vmatpush1.msra.mxu0 0.0
    %515 = vmatprep.subr.mxu0 0.0
    %516 = vmatpush1.msra.mxu0 0.0
    %517 = vmatprep.subr.mxu0 0.0
    %518 = vmatpush1.msra.mxu0 0.0
    %519 = vmatprep.subr.mxu0 0.0
    %520 = vmatpush1.msra.mxu0 0.0
    %521 = vmatprep.subr.mxu0 0.0
    %522 = vmatpush1.msra.mxu0 0.0
    %523 = vmatprep.subr.mxu0 0.0
    %524 = vmatpush1.msra.mxu0 0.0
    %525 = vmatprep.subr.mxu0 0.0
    %526 = vmatpush1.msra.mxu0 0.0
    %527 = vmatprep.subr.mxu0 0.0
    %528 = vmatpush1.msra.mxu0 0.0
    %529 = vmatprep.subr.mxu0 0.0
    %530 = vmatpush1.msra.mxu0 0.0
    %531 = vmatprep.subr.mxu0 0.0
    %532 = vmatpush1.msra.mxu0 0.0
    %533 = vmatprep.subr.mxu0 0.0
    %534 = vmatpush1.msra.mxu0 0.0
    %535 = vmatprep.mubr.f32.mxu0 0.0
    %536 = vmatmul.mubr.f32.gmra.mrb[0].mxu0 %v469
    %v537 = vpop.f32.mrb[0].mxu0
    %v538 = vadd.f32 %v464, %v537
    %v539 = vpop.f32.mrb[0].mxu0
    %540 = vdwg.mxu0
    %v541 = vxor.u32 %v538, 2147483648
    %v542 = vmul.f32 %v541, 1.442695
    %v543 = vpow.pop %v542
    %v544 = vadd.f32 %v543, 1.0
    %v545 = vrcp.pop %v544
    %v546 = vmul.f32 1.0, %v545
    %v547 = vtanh.pop %v538
    %v548 = vmul.f32 %v546, %v355
    %550 = vrot.lane.b32.xlu0 %v547, 32
    %v551 = vpop.permute.xlu0 %550
    %v553 = vmul.f32 %v546, %v551
    %555 = vrot.lane.b32.xlu0 %v553, 32
    %v556 = vpop.permute.xlu0 %555
    %v558 = vadd.f32 %v548, %v556
    %v559 = vtanh.pop %v558
    %561 = vrot.lane.b32.xlu0 %v559, 32
    %v562 = vpop.permute.xlu0 %561
    %v564 = vmul.f32 %v546, %v562
    %v565 = vadd.f32 %v362, %v564
    %567 = vrot.lane.b32.xlu0 %v461, 64
    %v568 = vpop.permute.xlu0 %567
    %v569 = vsel %vm66, %v568, 0
    %571 = vmatprep.subr.mxu0 0.0
    %572 = vmatpush1.msra.mxu0 %v60
    %573 = vmatprep.subr.mxu0 0.0
    %574 = vmatpush1.msra.mxu0 %v61
    %575 = vmatprep.subr.mxu0 0.0
    %576 = vmatpush1.msra.mxu0 %v62
    %577 = vmatprep.subr.mxu0 0.0
    %578 = vmatpush1.msra.mxu0 %v63
    %579 = vmatprep.subr.mxu0 0.0
    %580 = vmatpush1.msra.mxu0 0.0
    %581 = vmatprep.subr.mxu0 0.0
    %582 = vmatpush1.msra.mxu0 0.0
    %583 = vmatprep.subr.mxu0 0.0
    %584 = vmatpush1.msra.mxu0 0.0
    %585 = vmatprep.subr.mxu0 0.0
    %586 = vmatpush1.msra.mxu0 0.0
    %587 = vmatprep.subr.mxu0 0.0
    %588 = vmatpush1.msra.mxu0 0.0
    %589 = vmatprep.subr.mxu0 0.0
    %590 = vmatpush1.msra.mxu0 0.0
    %591 = vmatprep.subr.mxu0 0.0
    %592 = vmatpush1.msra.mxu0 0.0
    %593 = vmatprep.subr.mxu0 0.0
    %594 = vmatpush1.msra.mxu0 0.0
    %595 = vmatprep.subr.mxu0 0.0
    %596 = vmatpush1.msra.mxu0 0.0
    %597 = vmatprep.subr.mxu0 0.0
    %598 = vmatpush1.msra.mxu0 0.0
    %599 = vmatprep.subr.mxu0 0.0
    %600 = vmatpush1.msra.mxu0 0.0
    %601 = vmatprep.subr.mxu0 0.0
    %602 = vmatpush1.msra.mxu0 0.0
    %603 = vmatprep.subr.mxu0 0.0
    %604 = vmatpush1.msra.mxu0 0.0
    %605 = vmatprep.subr.mxu0 0.0
    %606 = vmatpush1.msra.mxu0 0.0
    %607 = vmatprep.subr.mxu0 0.0
    %608 = vmatpush1.msra.mxu0 0.0
    %609 = vmatprep.subr.mxu0 0.0
    %610 = vmatpush1.msra.mxu0 0.0
    %611 = vmatprep.subr.mxu0 0.0
    %612 = vmatpush1.msra.mxu0 0.0
    %613 = vmatprep.subr.mxu0 0.0
    %614 = vmatpush1.msra.mxu0 0.0
    %615 = vmatprep.subr.mxu0 0.0
    %616 = vmatpush1.msra.mxu0 0.0
    %617 = vmatprep.subr.mxu0 0.0
    %618 = vmatpush1.msra.mxu0 0.0
    %619 = vmatprep.subr.mxu0 0.0
    %620 = vmatpush1.msra.mxu0 0.0
    %621 = vmatprep.subr.mxu0 0.0
    %622 = vmatpush1.msra.mxu0 0.0
    %623 = vmatprep.subr.mxu0 0.0
    %624 = vmatpush1.msra.mxu0 0.0
    %625 = vmatprep.subr.mxu0 0.0
    %626 = vmatpush1.msra.mxu0 0.0
    %627 = vmatprep.subr.mxu0 0.0
    %628 = vmatpush1.msra.mxu0 0.0
    %629 = vmatprep.subr.mxu0 0.0
    %630 = vmatpush1.msra.mxu0 0.0
    %631 = vmatprep.subr.mxu0 0.0
    %632 = vmatpush1.msra.mxu0 0.0
    %633 = vmatprep.subr.mxu0 0.0
    %634 = vmatpush1.msra.mxu0 0.0
    %635 = vmatprep.mubr.f32.mxu0 0.0
    %636 = vmatmul.mubr.f32.gmra.mrb[0].mxu0 %v569
    %v637 = vpop.f32.mrb[0].mxu0
    %v638 = vadd.f32 %v465, %v637
    %v639 = vpop.f32.mrb[0].mxu0
    %640 = vdwg.mxu0
    %v641 = vxor.u32 %v638, 2147483648
    %v642 = vmul.f32 %v641, 1.442695
    %v643 = vpow.pop %v642
    %v644 = vadd.f32 %v643, 1.0
    %v645 = vrcp.pop %v644
    %v646 = vmul.f32 1.0, %v645
    %v647 = vtanh.pop %v638
    %v648 = vmul.f32 %v646, %v455
    %650 = vrot.lane.b32.xlu0 %v647, 32
    %v651 = vpop.permute.xlu0 %650
    %v653 = vmul.f32 %v646, %v651
    %655 = vrot.lane.b32.xlu0 %v653, 32
    %v656 = vpop.permute.xlu0 %655
    %v658 = vadd.f32 %v648, %v656
    %v659 = vtanh.pop %v658
    %661 = vrot.lane.b32.xlu0 %v659, 32
    %v662 = vpop.permute.xlu0 %661
    %v664 = vmul.f32 %v646, %v662
    %v665 = vadd.f32 %v462, %v664
    %s666 = scalar_lea.vmem [#allocation2], 48
    %v667 = vld [vmem:[%s666] sm:$0xff]
    %v668 = vld [vmem:[%s666 + $0x8] sm:$0xff]
    %670 = vrot.lane.b32.xlu0 %v564, 64
    %v671 = vpop.permute.xlu0 %670
    %v672 = vsel %vm66, %v671, 0
    %674 = vmatprep.subr.mxu0 0.0
    %675 = vmatpush1.msra.mxu0 %v56
    %676 = vmatprep.subr.mxu0 0.0
    %677 = vmatpush1.msra.mxu0 %v57
    %678 = vmatprep.subr.mxu0 0.0
    %679 = vmatpush1.msra.mxu0 %v58
    %680 = vmatprep.subr.mxu0 0.0
    %681 = vmatpush1.msra.mxu0 %v59
    %682 = vmatprep.subr.mxu0 0.0
    %683 = vmatpush1.msra.mxu0 0.0
    %684 = vmatprep.subr.mxu0 0.0
    %685 = vmatpush1.msra.mxu0 0.0
    %686 = vmatprep.subr.mxu0 0.0
    %687 = vmatpush1.msra.mxu0 0.0
    %688 = vmatprep.subr.mxu0 0.0
    %689 = vmatpush1.msra.mxu0 0.0
    %690 = vmatprep.subr.mxu0 0.0
    %691 = vmatpush1.msra.mxu0 0.0
    %692 = vmatprep.subr.mxu0 0.0
    %693 = vmatpush1.msra.mxu0 0.0
    %694 = vmatprep.subr.mxu0 0.0
    %695 = vmatpush1.msra.mxu0 0.0
    %696 = vmatprep.subr.mxu0 0.0
    %697 = vmatpush1.msra.mxu0 0.0
    %698 = vmatprep.subr.mxu0 0.0
    %699 = vmatpush1.msra.mxu0 0.0
    %700 = vmatprep.subr.mxu0 0.0
    %701 = vmatpush1.msra.mxu0 0.0
    %702 = vmatprep.subr.mxu0 0.0
    %703 = vmatpush1.msra.mxu0 0.0
    %704 = vmatprep.subr.mxu0 0.0
    %705 = vmatpush1.msra.mxu0 0.0
    %706 = vmatprep.subr.mxu0 0.0
    %707 = vmatpush1.msra.mxu0 0.0
    %708 = vmatprep.subr.mxu0 0.0
    %709 = vmatpush1.msra.mxu0 0.0
    %710 = vmatprep.subr.mxu0 0.0
    %711 = vmatpush1.msra.mxu0 0.0
    %712 = vmatprep.subr.mxu0 0.0
    %713 = vmatpush1.msra.mxu0 0.0
    %714 = vmatprep.subr.mxu0 0.0
    %715 = vmatpush1.msra.mxu0 0.0
    %716 = vmatprep.subr.mxu0 0.0
    %717 = vmatpush1.msra.mxu0 0.0
    %718 = vmatprep.subr.mxu0 0.0
    %719 = vmatpush1.msra.mxu0 0.0
    %720 = vmatprep.subr.mxu0 0.0
    %721 = vmatpush1.msra.mxu0 0.0
    %722 = vmatprep.subr.mxu0 0.0
    %723 = vmatpush1.msra.mxu0 0.0
    %724 = vmatprep.subr.mxu0 0.0
    %725 = vmatpush1.msra.mxu0 0.0
    %726 = vmatprep.subr.mxu0 0.0
    %727 = vmatpush1.msra.mxu0 0.0
    %728 = vmatprep.subr.mxu0 0.0
    %729 = vmatpush1.msra.mxu0 0.0
    %730 = vmatprep.subr.mxu0 0.0
    %731 = vmatpush1.msra.mxu0 0.0
    %732 = vmatprep.subr.mxu0 0.0
    %733 = vmatpush1.msra.mxu0 0.0
    %734 = vmatprep.subr.mxu0 0.0
    %735 = vmatpush1.msra.mxu0 0.0
    %736 = vmatprep.subr.mxu0 0.0
    %737 = vmatpush1.msra.mxu0 0.0
    %738 = vmatprep.mubr.f32.mxu0 0.0
    %739 = vmatmul.mubr.f32.gmra.mrb[0].mxu0 %v672
    %v740 = vpop.f32.mrb[0].mxu0
    %v741 = vadd.f32 %v667, %v740
    %v742 = vpop.f32.mrb[0].mxu0
    %743 = vdwg.mxu0
    %v744 = vxor.u32 %v741, 2147483648
    %v745 = vmul.f32 %v744, 1.442695
    %v746 = vpow.pop %v745
    %v747 = vadd.f32 %v746, 1.0
    %v748 = vrcp.pop %v747
    %v749 = vmul.f32 1.0, %v748
    %v750 = vtanh.pop %v741
    %v751 = vmul.f32 %v749, %v558
    %753 = vrot.lane.b32.xlu0 %v750, 32
    %v754 = vpop.permute.xlu0 %753
    %v756 = vmul.f32 %v749, %v754
    %758 = vrot.lane.b32.xlu0 %v756, 32
    %v759 = vpop.permute.xlu0 %758
    %v761 = vadd.f32 %v751, %v759
    %v762 = vtanh.pop %v761
    %764 = vrot.lane.b32.xlu0 %v762, 32
    %v765 = vpop.permute.xlu0 %764
    %v767 = vmul.f32 %v749, %v765
    %v768 = vadd.f32 %v565, %v767
    %770 = vrot.lane.b32.xlu0 %v664, 64
    %v771 = vpop.permute.xlu0 %770
    %v772 = vsel %vm66, %v771, 0
    %774 = vmatprep.subr.mxu0 0.0
    %775 = vmatpush1.msra.mxu0 %v60
    %776 = vmatprep.subr.mxu0 0.0
    %777 = vmatpush1.msra.mxu0 %v61
    %778 = vmatprep.subr.mxu0 0.0
    %779 = vmatpush1.msra.mxu0 %v62
    %780 = vmatprep.subr.mxu0 0.0
    %781 = vmatpush1.msra.mxu0 %v63
    %782 = vmatprep.subr.mxu0 0.0
    %783 = vmatpush1.msra.mxu0 0.0
    %784 = vmatprep.subr.mxu0 0.0
    %785 = vmatpush1.msra.mxu0 0.0
    %786 = vmatprep.subr.mxu0 0.0
    %787 = vmatpush1.msra.mxu0 0.0
    %788 = vmatprep.subr.mxu0 0.0
    %789 = vmatpush1.msra.mxu0 0.0
    %790 = vmatprep.subr.mxu0 0.0
    %791 = vmatpush1.msra.mxu0 0.0
    %792 = vmatprep.subr.mxu0 0.0
    %793 = vmatpush1.msra.mxu0 0.0
    %794 = vmatprep.subr.mxu0 0.0
    %795 = vmatpush1.msra.mxu0 0.0
    %796 = vmatprep.subr.mxu0 0.0
    %797 = vmatpush1.msra.mxu0 0.0
    %798 = vmatprep.subr.mxu0 0.0
    %799 = vmatpush1.msra.mxu0 0.0
    %800 = vmatprep.subr.mxu0 0.0
    %801 = vmatpush1.msra.mxu0 0.0
    %802 = vmatprep.subr.mxu0 0.0
    %803 = vmatpush1.msra.mxu0 0.0
    %804 = vmatprep.subr.mxu0 0.0
    %805 = vmatpush1.msra.mxu0 0.0
    %806 = vmatprep.subr.mxu0 0.0
    %807 = vmatpush1.msra.mxu0 0.0
    %808 = vmatprep.subr.mxu0 0.0
    %809 = vmatpush1.msra.mxu0 0.0
    %810 = vmatprep.subr.mxu0 0.0
    %811 = vmatpush1.msra.mxu0 0.0
    %812 = vmatprep.subr.mxu0 0.0
    %813 = vmatpush1.msra.mxu0 0.0
    %814 = vmatprep.subr.mxu0 0.0
    %815 = vmatpush1.msra.mxu0 0.0
    %816 = vmatprep.subr.mxu0 0.0
    %817 = vmatpush1.msra.mxu0 0.0
    %818 = vmatprep.subr.mxu0 0.0
    %819 = vmatpush1.msra.mxu0 0.0
    %820 = vmatprep.subr.mxu0 0.0
    %821 = vmatpush1.msra.mxu0 0.0
    %822 = vmatprep.subr.mxu0 0.0
    %823 = vmatpush1.msra.mxu0 0.0
    %824 = vmatprep.subr.mxu0 0.0
    %825 = vmatpush1.msra.mxu0 0.0
    %826 = vmatprep.subr.mxu0 0.0
    %827 = vmatpush1.msra.mxu0 0.0
    %828 = vmatprep.subr.mxu0 0.0
    %829 = vmatpush1.msra.mxu0 0.0
    %830 = vmatprep.subr.mxu0 0.0
    %831 = vmatpush1.msra.mxu0 0.0
    %832 = vmatprep.subr.mxu0 0.0
    %833 = vmatpush1.msra.mxu0 0.0
    %834 = vmatprep.subr.mxu0 0.0
    %835 = vmatpush1.msra.mxu0 0.0
    %836 = vmatprep.subr.mxu0 0.0
    %837 = vmatpush1.msra.mxu0 0.0
    %838 = vmatprep.mubr.f32.mxu0 0.0
    %839 = vmatmul.mubr.f32.gmra.mrb[0].mxu0 %v772
    %v840 = vpop.f32.mrb[0].mxu0
    %v841 = vadd.f32 %v668, %v840
    %v842 = vpop.f32.mrb[0].mxu0
    %843 = vdwg.mxu0
    %v844 = vxor.u32 %v841, 2147483648
    %v845 = vmul.f32 %v844, 1.442695
    %v846 = vpow.pop %v845
    %v847 = vadd.f32 %v846, 1.0
    %v848 = vrcp.pop %v847
    %v849 = vmul.f32 1.0, %v848
    %v850 = vtanh.pop %v841
    %v851 = vmul.f32 %v849, %v658
    %853 = vrot.lane.b32.xlu0 %v850, 32
    %v854 = vpop.permute.xlu0 %853
    %v856 = vmul.f32 %v849, %v854
    %858 = vrot.lane.b32.xlu0 %v856, 32
    %v859 = vpop.permute.xlu0 %858
    %v861 = vadd.f32 %v851, %v859
    %v862 = vtanh.pop %v861
    %864 = vrot.lane.b32.xlu0 %v862, 32
    %v865 = vpop.permute.xlu0 %864
    %v867 = vmul.f32 %v849, %v865
    %v868 = vadd.f32 %v665, %v867
    %s869 = scalar_lea.vmem [#allocation2], 64
    %v870 = vld [vmem:[%s869] sm:$0xff]
    %v871 = vld [vmem:[%s869 + $0x8] sm:$0xff]
    %873 = vrot.lane.b32.xlu0 %v767, 64
    %v874 = vpop.permute.xlu0 %873
    %v875 = vsel %vm66, %v874, 0
    %877 = vmatprep.subr.mxu0 0.0
    %878 = vmatpush1.msra.mxu0 %v56
    %879 = vmatprep.subr.mxu0 0.0
    %880 = vmatpush1.msra.mxu0 %v57
    %881 = vmatprep.subr.mxu0 0.0
    %882 = vmatpush1.msra.mxu0 %v58
    %883 = vmatprep.subr.mxu0 0.0
    %884 = vmatpush1.msra.mxu0 %v59
    %885 = vmatprep.subr.mxu0 0.0
    %886 = vmatpush1.msra.mxu0 0.0
    %887 = vmatprep.subr.mxu0 0.0
    %888 = vmatpush1.msra.mxu0 0.0
    %889 = vmatprep.subr.mxu0 0.0
    %890 = vmatpush1.msra.mxu0 0.0
    %891 = vmatprep.subr.mxu0 0.0
    %892 = vmatpush1.msra.mxu0 0.0
    %893 = vmatprep.subr.mxu0 0.0
    %894 = vmatpush1.msra.mxu0 0.0
    %895 = vmatprep.subr.mxu0 0.0
    %896 = vmatpush1.msra.mxu0 0.0
    %897 = vmatprep.subr.mxu0 0.0
    %898 = vmatpush1.msra.mxu0 0.0
    %899 = vmatprep.subr.mxu0 0.0
    %900 = vmatpush1.msra.mxu0 0.0
    %901 = vmatprep.subr.mxu0 0.0
    %902 = vmatpush1.msra.mxu0 0.0
    %903 = vmatprep.subr.mxu0 0.0
    %904 = vmatpush1.msra.mxu0 0.0
    %905 = vmatprep.subr.mxu0 0.0
    %906 = vmatpush1.msra.mxu0 0.0
    %907 = vmatprep.subr.mxu0 0.0
    %908 = vmatpush1.msra.mxu0 0.0
    %909 = vmatprep.subr.mxu0 0.0
    %910 = vmatpush1.msra.mxu0 0.0
    %911 = vmatprep.subr.mxu0 0.0
    %912 = vmatpush1.msra.mxu0 0.0
    %913 = vmatprep.subr.mxu0 0.0
    %914 = vmatpush1.msra.mxu0 0.0
    %915 = vmatprep.subr.mxu0 0.0
    %916 = vmatpush1.msra.mxu0 0.0
    %917 = vmatprep.subr.mxu0 0.0
    %918 = vmatpush1.msra.mxu0 0.0
    %919 = vmatprep.subr.mxu0 0.0
    %920 = vmatpush1.msra.mxu0 0.0
    %921 = vmatprep.subr.mxu0 0.0
    %922 = vmatpush1.msra.mxu0 0.0
    %923 = vmatprep.subr.mxu0 0.0
    %924 = vmatpush1.msra.mxu0 0.0
    %925 = vmatprep.subr.mxu0 0.0
    %926 = vmatpush1.msra.mxu0 0.0
    %927 = vmatprep.subr.mxu0 0.0
    %928 = vmatpush1.msra.mxu0 0.0
    %929 = vmatprep.subr.mxu0 0.0
    %930 = vmatpush1.msra.mxu0 0.0
    %931 = vmatprep.subr.mxu0 0.0
    %932 = vmatpush1.msra.mxu0 0.0
    %933 = vmatprep.subr.mxu0 0.0
    %934 = vmatpush1.msra.mxu0 0.0
    %935 = vmatprep.subr.mxu0 0.0
    %936 = vmatpush1.msra.mxu0 0.0
    %937 = vmatprep.subr.mxu0 0.0
    %938 = vmatpush1.msra.mxu0 0.0
    %939 = vmatprep.subr.mxu0 0.0
    %940 = vmatpush1.msra.mxu0 0.0
    %941 = vmatprep.mubr.f32.mxu0 0.0
    %942 = vmatmul.mubr.f32.gmra.mrb[0].mxu0 %v875
    %v943 = vpop.f32.mrb[0].mxu0
    %v944 = vadd.f32 %v870, %v943
    %v945 = vpop.f32.mrb[0].mxu0
    %946 = vdwg.mxu0
    %v947 = vxor.u32 %v944, 2147483648
    %v948 = vmul.f32 %v947, 1.442695
    %v949 = vpow.pop %v948
    %v950 = vadd.f32 %v949, 1.0
    %v951 = vrcp.pop %v950
    %v952 = vmul.f32 1.0, %v951
    %v953 = vtanh.pop %v944
    %v954 = vmul.f32 %v952, %v761
    %956 = vrot.lane.b32.xlu0 %v953, 32
    %v957 = vpop.permute.xlu0 %956
    %v959 = vmul.f32 %v952, %v957
    %961 = vrot.lane.b32.xlu0 %v959, 32
    %v962 = vpop.permute.xlu0 %961
    %v964 = vadd.f32 %v954, %v962
    %v965 = vtanh.pop %v964
    %967 = vrot.lane.b32.xlu0 %v965, 32
    %v968 = vpop.permute.xlu0 %967
    %v970 = vmul.f32 %v952, %v968
    %v971 = vadd.f32 %v768, %v970
    %973 = vrot.lane.b32.xlu0 %v867, 64
    %v974 = vpop.permute.xlu0 %973
    %v975 = vsel %vm66, %v974, 0
    %977 = vmatprep.subr.mxu0 0.0
    %978 = vmatpush1.msra.mxu0 %v60
    %979 = vmatprep.subr.mxu0 0.0
    %980 = vmatpush1.msra.mxu0 %v61
    %981 = vmatprep.subr.mxu0 0.0
    %982 = vmatpush1.msra.mxu0 %v62
    %983 = vmatprep.subr.mxu0 0.0
    %984 = vmatpush1.msra.mxu0 %v63
    %985 = vmatprep.subr.mxu0 0.0
    %986 = vmatpush1.msra.mxu0 0.0
    %987 = vmatprep.subr.mxu0 0.0
    %988 = vmatpush1.msra.mxu0 0.0
    %989 = vmatprep.subr.mxu0 0.0
    %990 = vmatpush1.msra.mxu0 0.0
    %991 = vmatprep.subr.mxu0 0.0
    %992 = vmatpush1.msra.mxu0 0.0
    %993 = vmatprep.subr.mxu0 0.0
    %994 = vmatpush1.msra.mxu0 0.0
    %995 = vmatprep.subr.mxu0 0.0
    %996 = vmatpush1.msra.mxu0 0.0
    %997 = vmatprep.subr.mxu0 0.0
    %998 = vmatpush1.msra.mxu0 0.0
    %999 = vmatprep.subr.mxu0 0.0
    %1000 = vmatpush1.msra.mxu0 0.0
    %1001 = vmatprep.subr.mxu0 0.0
    %1002 = vmatpush1.msra.mxu0 0.0
    %1003 = vmatprep.subr.mxu0 0.0
    %1004 = vmatpush1.msra.mxu0 0.0
    %1005 = vmatprep.subr.mxu0 0.0
    %1006 = vmatpush1.msra.mxu0 0.0
    %1007 = vmatprep.subr.mxu0 0.0
    %1008 = vmatpush1.msra.mxu0 0.0
    %1009 = vmatprep.subr.mxu0 0.0
    %1010 = vmatpush1.msra.mxu0 0.0
    %1011 = vmatprep.subr.mxu0 0.0
    %1012 = vmatpush1.msra.mxu0 0.0
    %1013 = vmatprep.subr.mxu0 0.0
    %1014 = vmatpush1.msra.mxu0 0.0
    %1015 = vmatprep.subr.mxu0 0.0
    %1016 = vmatpush1.msra.mxu0 0.0
    %1017 = vmatprep.subr.mxu0 0.0
    %1018 = vmatpush1.msra.mxu0 0.0
    %1019 = vmatprep.subr.mxu0 0.0
    %1020 = vmatpush1.msra.mxu0 0.0
    %1021 = vmatprep.subr.mxu0 0.0
    %1022 = vmatpush1.msra.mxu0 0.0
    %1023 = vmatprep.subr.mxu0 0.0
    %1024 = vmatpush1.msra.mxu0 0.0
    %1025 = vmatprep.subr.mxu0 0.0
    %1026 = vmatpush1.msra.mxu0 0.0
    %1027 = vmatprep.subr.mxu0 0.0
    %1028 = vmatpush1.msra.mxu0 0.0
    %1029 = vmatprep.subr.mxu0 0.0
    %1030 = vmatpush1.msra.mxu0 0.0
    %1031 = vmatprep.subr.mxu0 0.0
    %1032 = vmatpush1.msra.mxu0 0.0
    %1033 = vmatprep.subr.mxu0 0.0
    %1034 = vmatpush1.msra.mxu0 0.0
    %1035 = vmatprep.subr.mxu0 0.0
    %1036 = vmatpush1.msra.mxu0 0.0
    %1037 = vmatprep.subr.mxu0 0.0
    %1038 = vmatpush1.msra.mxu0 0.0
    %1039 = vmatprep.subr.mxu0 0.0
    %1040 = vmatpush1.msra.mxu0 0.0
    %1041 = vmatprep.mubr.f32.mxu0 0.0
    %1042 = vmatmul.mubr.f32.gmra.mrb[0].mxu0 %v975
    %v1043 = vpop.f32.mrb[0].mxu0
    %v1044 = vadd.f32 %v871, %v1043
    %v1045 = vpop.f32.mrb[0].mxu0
    %1046 = vdwg.mxu0
    %v1047 = vxor.u32 %v1044, 2147483648
    %v1048 = vmul.f32 %v1047, 1.442695
    %v1049 = vpow.pop %v1048
    %v1050 = vadd.f32 %v1049, 1.0
    %v1051 = vrcp.pop %v1050
    %v1052 = vmul.f32 1.0, %v1051
    %v1053 = vtanh.pop %v1044
    %v1054 = vmul.f32 %v1052, %v861
    %1056 = vrot.lane.b32.xlu0 %v1053, 32
    %v1057 = vpop.permute.xlu0 %1056
    %v1059 = vmul.f32 %v1052, %v1057
    %1061 = vrot.lane.b32.xlu0 %v1059, 32
    %v1062 = vpop.permute.xlu0 %1061
    %v1064 = vadd.f32 %v1054, %v1062
    %v1065 = vtanh.pop %v1064
    %1067 = vrot.lane.b32.xlu0 %v1065, 32
    %v1068 = vpop.permute.xlu0 %1067
    %v1070 = vmul.f32 %v1052, %v1068
    %v1071 = vadd.f32 %v868, %v1070
    %s1072 = scalar_lea.vmem [#allocation2], 80
    %v1073 = vld [vmem:[%s1072] sm:$0xff]
    %v1074 = vld [vmem:[%s1072 + $0x8] sm:$0xff]
    %1076 = vrot.lane.b32.xlu0 %v970, 64
    %v1077 = vpop.permute.xlu0 %1076
    %v1078 = vsel %vm66, %v1077, 0
    %1080 = vmatprep.subr.mxu0 0.0
    %1081 = vmatpush1.msra.mxu0 %v56
    %1082 = vmatprep.subr.mxu0 0.0
    %1083 = vmatpush1.msra.mxu0 %v57
    %1084 = vmatprep.subr.mxu0 0.0
    %1085 = vmatpush1.msra.mxu0 %v58
    %1086 = vmatprep.subr.mxu0 0.0
    %1087 = vmatpush1.msra.mxu0 %v59
    %1088 = vmatprep.subr.mxu0 0.0
    %1089 = vmatpush1.msra.mxu0 0.0
    %1090 = vmatprep.subr.mxu0 0.0
    %1091 = vmatpush1.msra.mxu0 0.0
    %1092 = vmatprep.subr.mxu0 0.0
    %1093 = vmatpush1.msra.mxu0 0.0
    %1094 = vmatprep.subr.mxu0 0.0
    %1095 = vmatpush1.msra.mxu0 0.0
    %1096 = vmatprep.subr.mxu0 0.0
    %1097 = vmatpush1.msra.mxu0 0.0
    %1098 = vmatprep.subr.mxu0 0.0
    %1099 = vmatpush1.msra.mxu0 0.0
    %1100 = vmatprep.subr.mxu0 0.0
    %1101 = vmatpush1.msra.mxu0 0.0
    %1102 = vmatprep.subr.mxu0 0.0
    %1103 = vmatpush1.msra.mxu0 0.0
    %1104 = vmatprep.subr.mxu0 0.0
    %1105 = vmatpush1.msra.mxu0 0.0
    %1106 = vmatprep.subr.mxu0 0.0
    %1107 = vmatpush1.msra.mxu0 0.0
    %1108 = vmatprep.subr.mxu0 0.0
    %1109 = vmatpush1.msra.mxu0 0.0
    %1110 = vmatprep.subr.mxu0 0.0
    %1111 = vmatpush1.msra.mxu0 0.0
    %1112 = vmatprep.subr.mxu0 0.0
    %1113 = vmatpush1.msra.mxu0 0.0
    %1114 = vmatprep.subr.mxu0 0.0
    %1115 = vmatpush1.msra.mxu0 0.0
    %1116 = vmatprep.subr.mxu0 0.0
    %1117 = vmatpush1.msra.mxu0 0.0
    %1118 = vmatprep.subr.mxu0 0.0
    %1119 = vmatpush1.msra.mxu0 0.0
    %1120 = vmatprep.subr.mxu0 0.0
    %1121 = vmatpush1.msra.mxu0 0.0
    %1122 = vmatprep.subr.mxu0 0.0
    %1123 = vmatpush1.msra.mxu0 0.0
    %1124 = vmatprep.subr.mxu0 0.0
    %1125 = vmatpush1.msra.mxu0 0.0
    %1126 = vmatprep.subr.mxu0 0.0
    %1127 = vmatpush1.msra.mxu0 0.0
    %1128 = vmatprep.subr.mxu0 0.0
    %1129 = vmatpush1.msra.mxu0 0.0
    %1130 = vmatprep.subr.mxu0 0.0
    %1131 = vmatpush1.msra.mxu0 0.0
    %1132 = vmatprep.subr.mxu0 0.0
    %1133 = vmatpush1.msra.mxu0 0.0
    %1134 = vmatprep.subr.mxu0 0.0
    %1135 = vmatpush1.msra.mxu0 0.0
    %1136 = vmatprep.subr.mxu0 0.0
    %1137 = vmatpush1.msra.mxu0 0.0
    %1138 = vmatprep.subr.mxu0 0.0
    %1139 = vmatpush1.msra.mxu0 0.0
    %1140 = vmatprep.subr.mxu0 0.0
    %1141 = vmatpush1.msra.mxu0 0.0
    %1142 = vmatprep.subr.mxu0 0.0
    %1143 = vmatpush1.msra.mxu0 0.0
    %1144 = vmatprep.mubr.f32.mxu0 0.0
    %1145 = vmatmul.mubr.f32.gmra.mrb[0].mxu0 %v1078
    %v1146 = vpop.f32.mrb[0].mxu0
    %v1147 = vadd.f32 %v1073, %v1146
    %v1148 = vpop.f32.mrb[0].mxu0
    %1149 = vdwg.mxu0
    %v1150 = vxor.u32 %v1147, 2147483648
    %v1151 = vmul.f32 %v1150, 1.442695
    %v1152 = vpow.pop %v1151
    %v1153 = vadd.f32 %v1152, 1.0
    %v1154 = vrcp.pop %v1153
    %v1155 = vmul.f32 1.0, %v1154
    %v1156 = vtanh.pop %v1147
    %v1157 = vmul.f32 %v1155, %v964
    %1159 = vrot.lane.b32.xlu0 %v1156, 32
    %v1160 = vpop.permute.xlu0 %1159
    %v1162 = vmul.f32 %v1155, %v1160
    %1164 = vrot.lane.b32.xlu0 %v1162, 32
    %v1165 = vpop.permute.xlu0 %1164
    %v1167 = vadd.f32 %v1157, %v1165
    %v1168 = vtanh.pop %v1167
    %1170 = vrot.lane.b32.xlu0 %v1168, 32
    %v1171 = vpop.permute.xlu0 %1170
    %v1173 = vmul.f32 %v1155, %v1171
    %v1174 = vadd.f32 %v971, %v1173
    %1176 = vrot.lane.b32.xlu0 %v1070, 64
    %v1177 = vpop.permute.xlu0 %1176
    %v1178 = vsel %vm66, %v1177, 0
    %1180 = vmatprep.subr.mxu0 0.0
    %1181 = vmatpush1.msra.mxu0 %v60
    %1182 = vmatprep.subr.mxu0 0.0
    %1183 = vmatpush1.msra.mxu0 %v61
    %1184 = vmatprep.subr.mxu0 0.0
    %1185 = vmatpush1.msra.mxu0 %v62
    %1186 = vmatprep.subr.mxu0 0.0
    %1187 = vmatpush1.msra.mxu0 %v63
    %1188 = vmatprep.subr.mxu0 0.0
    %1189 = vmatpush1.msra.mxu0 0.0
    %1190 = vmatprep.subr.mxu0 0.0
    %1191 = vmatpush1.msra.mxu0 0.0
    %1192 = vmatprep.subr.mxu0 0.0
    %1193 = vmatpush1.msra.mxu0 0.0
    %1194 = vmatprep.subr.mxu0 0.0
    %1195 = vmatpush1.msra.mxu0 0.0
    %1196 = vmatprep.subr.mxu0 0.0
    %1197 = vmatpush1.msra.mxu0 0.0
    %1198 = vmatprep.subr.mxu0 0.0
    %1199 = vmatpush1.msra.mxu0 0.0
    %1200 = vmatprep.subr.mxu0 0.0
    %1201 = vmatpush1.msra.mxu0 0.0
    %1202 = vmatprep.subr.mxu0 0.0
    %1203 = vmatpush1.msra.mxu0 0.0
    %1204 = vmatprep.subr.mxu0 0.0
    %1205 = vmatpush1.msra.mxu0 0.0
    %1206 = vmatprep.subr.mxu0 0.0
    %1207 = vmatpush1.msra.mxu0 0.0
    %1208 = vmatprep.subr.mxu0 0.0
    %1209 = vmatpush1.msra.mxu0 0.0
    %1210 = vmatprep.subr.mxu0 0.0
    %1211 = vmatpush1.msra.mxu0 0.0
    %1212 = vmatprep.subr.mxu0 0.0
    %1213 = vmatpush1.msra.mxu0 0.0
    %1214 = vmatprep.subr.mxu0 0.0
    %1215 = vmatpush1.msra.mxu0 0.0
    %1216 = vmatprep.subr.mxu0 0.0
    %1217 = vmatpush1.msra.mxu0 0.0
    %1218 = vmatprep.subr.mxu0 0.0
    %1219 = vmatpush1.msra.mxu0 0.0
    %1220 = vmatprep.subr.mxu0 0.0
    %1221 = vmatpush1.msra.mxu0 0.0
    %1222 = vmatprep.subr.mxu0 0.0
    %1223 = vmatpush1.msra.mxu0 0.0
    %1224 = vmatprep.subr.mxu0 0.0
    %1225 = vmatpush1.msra.mxu0 0.0
    %1226 = vmatprep.subr.mxu0 0.0
    %1227 = vmatpush1.msra.mxu0 0.0
    %1228 = vmatprep.subr.mxu0 0.0
    %1229 = vmatpush1.msra.mxu0 0.0
    %1230 = vmatprep.subr.mxu0 0.0
    %1231 = vmatpush1.msra.mxu0 0.0
    %1232 = vmatprep.subr.mxu0 0.0
    %1233 = vmatpush1.msra.mxu0 0.0
    %1234 = vmatprep.subr.mxu0 0.0
    %1235 = vmatpush1.msra.mxu0 0.0
    %1236 = vmatprep.subr.mxu0 0.0
    %1237 = vmatpush1.msra.mxu0 0.0
    %1238 = vmatprep.subr.mxu0 0.0
    %1239 = vmatpush1.msra.mxu0 0.0
    %1240 = vmatprep.subr.mxu0 0.0
    %1241 = vmatpush1.msra.mxu0 0.0
    %1242 = vmatprep.subr.mxu0 0.0
    %1243 = vmatpush1.msra.mxu0 0.0
    %1244 = vmatprep.mubr.f32.mxu0 0.0
    %1245 = vmatmul.mubr.f32.gmra.mrb[0].mxu0 %v1178
    %v1246 = vpop.f32.mrb[0].mxu0
    %v1247 = vadd.f32 %v1074, %v1246
    %v1248 = vpop.f32.mrb[0].mxu0
    %1249 = vdwg.mxu0
    %v1250 = vxor.u32 %v1247, 2147483648
    %v1251 = vmul.f32 %v1250, 1.442695
    %v1252 = vpow.pop %v1251
    %v1253 = vadd.f32 %v1252, 1.0
    %v1254 = vrcp.pop %v1253
    %v1255 = vmul.f32 1.0, %v1254
    %v1256 = vtanh.pop %v1247
    %v1257 = vmul.f32 %v1255, %v1064
    %1259 = vrot.lane.b32.xlu0 %v1256, 32
    %v1260 = vpop.permute.xlu0 %1259
    %v1262 = vmul.f32 %v1255, %v1260
    %1264 = vrot.lane.b32.xlu0 %v1262, 32
    %v1265 = vpop.permute.xlu0 %1264
    %v1267 = vadd.f32 %v1257, %v1265
    %v1268 = vtanh.pop %v1267
    %1270 = vrot.lane.b32.xlu0 %v1268, 32
    %v1271 = vpop.permute.xlu0 %1270
    %v1273 = vmul.f32 %v1255, %v1271
    %v1274 = vadd.f32 %v1071, %v1273
    %s1275 = scalar_lea.vmem [#allocation2], 96
    %v1276 = vld [vmem:[%s1275] sm:$0xff]
    %v1277 = vld [vmem:[%s1275 + $0x8] sm:$0xff]
    %1279 = vrot.lane.b32.xlu0 %v1173, 64
    %v1280 = vpop.permute.xlu0 %1279
    %v1281 = vsel %vm66, %v1280, 0
    %1283 = vmatprep.subr.mxu0 0.0
    %1284 = vmatpush1.msra.mxu0 %v56
    %1285 = vmatprep.subr.mxu0 0.0
    %1286 = vmatpush1.msra.mxu0 %v57
    %1287 = vmatprep.subr.mxu0 0.0
    %1288 = vmatpush1.msra.mxu0 %v58
    %1289 = vmatprep.subr.mxu0 0.0
    %1290 = vmatpush1.msra.mxu0 %v59
    %1291 = vmatprep.subr.mxu0 0.0
    %1292 = vmatpush1.msra.mxu0 0.0
    %1293 = vmatprep.subr.mxu0 0.0
    %1294 = vmatpush1.msra.mxu0 0.0
    %1295 = vmatprep.subr.mxu0 0.0
    %1296 = vmatpush1.msra.mxu0 0.0
    %1297 = vmatprep.subr.mxu0 0.0
    %1298 = vmatpush1.msra.mxu0 0.0
    %1299 = vmatprep.subr.mxu0 0.0
    %1300 = vmatpush1.msra.mxu0 0.0
    %1301 = vmatprep.subr.mxu0 0.0
    %1302 = vmatpush1.msra.mxu0 0.0
    %1303 = vmatprep.subr.mxu0 0.0
    %1304 = vmatpush1.msra.mxu0 0.0
    %1305 = vmatprep.subr.mxu0 0.0
    %1306 = vmatpush1.msra.mxu0 0.0
    %1307 = vmatprep.subr.mxu0 0.0
    %1308 = vmatpush1.msra.mxu0 0.0
    %1309 = vmatprep.subr.mxu0 0.0
    %1310 = vmatpush1.msra.mxu0 0.0
    %1311 = vmatprep.subr.mxu0 0.0
    %1312 = vmatpush1.msra.mxu0 0.0
    %1313 = vmatprep.subr.mxu0 0.0
    %1314 = vmatpush1.msra.mxu0 0.0
    %1315 = vmatprep.subr.mxu0 0.0
    %1316 = vmatpush1.msra.mxu0 0.0
    %1317 = vmatprep.subr.mxu0 0.0
    %1318 = vmatpush1.msra.mxu0 0.0
    %1319 = vmatprep.subr.mxu0 0.0
    %1320 = vmatpush1.msra.mxu0 0.0
    %1321 = vmatprep.subr.mxu0 0.0
    %1322 = vmatpush1.msra.mxu0 0.0
    %1323 = vmatprep.subr.mxu0 0.0
    %1324 = vmatpush1.msra.mxu0 0.0
    %1325 = vmatprep.subr.mxu0 0.0
    %1326 = vmatpush1.msra.mxu0 0.0
    %1327 = vmatprep.subr.mxu0 0.0
    %1328 = vmatpush1.msra.mxu0 0.0
    %1329 = vmatprep.subr.mxu0 0.0
    %1330 = vmatpush1.msra.mxu0 0.0
    %1331 = vmatprep.subr.mxu0 0.0
    %1332 = vmatpush1.msra.mxu0 0.0
    %1333 = vmatprep.subr.mxu0 0.0
    %1334 = vmatpush1.msra.mxu0 0.0
    %1335 = vmatprep.subr.mxu0 0.0
    %1336 = vmatpush1.msra.mxu0 0.0
    %1337 = vmatprep.subr.mxu0 0.0
    %1338 = vmatpush1.msra.mxu0 0.0
    %1339 = vmatprep.subr.mxu0 0.0
    %1340 = vmatpush1.msra.mxu0 0.0
    %1341 = vmatprep.subr.mxu0 0.0
    %1342 = vmatpush1.msra.mxu0 0.0
    %1343 = vmatprep.subr.mxu0 0.0
    %1344 = vmatpush1.msra.mxu0 0.0
    %1345 = vmatprep.subr.mxu0 0.0
    %1346 = vmatpush1.msra.mxu0 0.0
    %1347 = vmatprep.mubr.f32.mxu0 0.0
    %1348 = vmatmul.mubr.f32.gmra.mrb[0].mxu0 %v1281
    %v1349 = vpop.f32.mrb[0].mxu0
    %v1350 = vadd.f32 %v1276, %v1349
    %v1351 = vpop.f32.mrb[0].mxu0
    %1352 = vdwg.mxu0
    %v1353 = vxor.u32 %v1350, 2147483648
    %v1354 = vmul.f32 %v1353, 1.442695
    %v1355 = vpow.pop %v1354
    %v1356 = vadd.f32 %v1355, 1.0
    %v1357 = vrcp.pop %v1356
    %v1358 = vmul.f32 1.0, %v1357
    %v1359 = vtanh.pop %v1350
    %v1360 = vmul.f32 %v1358, %v1167
    %1362 = vrot.lane.b32.xlu0 %v1359, 32
    %v1363 = vpop.permute.xlu0 %1362
    %v1365 = vmul.f32 %v1358, %v1363
    %1367 = vrot.lane.b32.xlu0 %v1365, 32
    %v1368 = vpop.permute.xlu0 %1367
    %v1370 = vadd.f32 %v1360, %v1368
    %v1371 = vtanh.pop %v1370
    %1373 = vrot.lane.b32.xlu0 %v1371, 32
    %v1374 = vpop.permute.xlu0 %1373
    %v1376 = vmul.f32 %v1358, %v1374
    %v1377 = vadd.f32 %v1174, %v1376
    %1379 = vrot.lane.b32.xlu0 %v1273, 64
    %v1380 = vpop.permute.xlu0 %1379
    %v1381 = vsel %vm66, %v1380, 0
    %1383 = vmatprep.subr.mxu0 0.0
    %1384 = vmatpush1.msra.mxu0 %v60
    %1385 = vmatprep.subr.mxu0 0.0
    %1386 = vmatpush1.msra.mxu0 %v61
    %1387 = vmatprep.subr.mxu0 0.0
    %1388 = vmatpush1.msra.mxu0 %v62
    %1389 = vmatprep.subr.mxu0 0.0
    %1390 = vmatpush1.msra.mxu0 %v63
    %1391 = vmatprep.subr.mxu0 0.0
    %1392 = vmatpush1.msra.mxu0 0.0
    %1393 = vmatprep.subr.mxu0 0.0
    %1394 = vmatpush1.msra.mxu0 0.0
    %1395 = vmatprep.subr.mxu0 0.0
    %1396 = vmatpush1.msra.mxu0 0.0
    %1397 = vmatprep.subr.mxu0 0.0
    %1398 = vmatpush1.msra.mxu0 0.0
    %1399 = vmatprep.subr.mxu0 0.0
    %1400 = vmatpush1.msra.mxu0 0.0
    %1401 = vmatprep.subr.mxu0 0.0
    %1402 = vmatpush1.msra.mxu0 0.0
    %1403 = vmatprep.subr.mxu0 0.0
    %1404 = vmatpush1.msra.mxu0 0.0
    %1405 = vmatprep.subr.mxu0 0.0
    %1406 = vmatpush1.msra.mxu0 0.0
    %1407 = vmatprep.subr.mxu0 0.0
    %1408 = vmatpush1.msra.mxu0 0.0
    %1409 = vmatprep.subr.mxu0 0.0
    %1410 = vmatpush1.msra.mxu0 0.0
    %1411 = vmatprep.subr.mxu0 0.0
    %1412 = vmatpush1.msra.mxu0 0.0
    %1413 = vmatprep.subr.mxu0 0.0
    %1414 = vmatpush1.msra.mxu0 0.0
    %1415 = vmatprep.subr.mxu0 0.0
    %1416 = vmatpush1.msra.mxu0 0.0
    %1417 = vmatprep.subr.mxu0 0.0
    %1418 = vmatpush1.msra.mxu0 0.0
    %1419 = vmatprep.subr.mxu0 0.0
    %1420 = vmatpush1.msra.mxu0 0.0
    %1421 = vmatprep.subr.mxu0 0.0
    %1422 = vmatpush1.msra.mxu0 0.0
    %1423 = vmatprep.subr.mxu0 0.0
    %1424 = vmatpush1.msra.mxu0 0.0
    %1425 = vmatprep.subr.mxu0 0.0
    %1426 = vmatpush1.msra.mxu0 0.0
    %1427 = vmatprep.subr.mxu0 0.0
    %1428 = vmatpush1.msra.mxu0 0.0
    %1429 = vmatprep.subr.mxu0 0.0
    %1430 = vmatpush1.msra.mxu0 0.0
    %1431 = vmatprep.subr.mxu0 0.0
    %1432 = vmatpush1.msra.mxu0 0.0
    %1433 = vmatprep.subr.mxu0 0.0
    %1434 = vmatpush1.msra.mxu0 0.0
    %1435 = vmatprep.subr.mxu0 0.0
    %1436 = vmatpush1.msra.mxu0 0.0
    %1437 = vmatprep.subr.mxu0 0.0
    %1438 = vmatpush1.msra.mxu0 0.0
    %1439 = vmatprep.subr.mxu0 0.0
    %1440 = vmatpush1.msra.mxu0 0.0
    %1441 = vmatprep.subr.mxu0 0.0
    %1442 = vmatpush1.msra.mxu0 0.0
    %1443 = vmatprep.subr.mxu0 0.0
    %1444 = vmatpush1.msra.mxu0 0.0
    %1445 = vmatprep.subr.mxu0 0.0
    %1446 = vmatpush1.msra.mxu0 0.0
    %1447 = vmatprep.mubr.f32.mxu0 0.0
    %1448 = vmatmul.mubr.f32.gmra.mrb[0].mxu0 %v1381
    %v1449 = vpop.f32.mrb[0].mxu0
    %v1450 = vadd.f32 %v1277, %v1449
    %v1451 = vpop.f32.mrb[0].mxu0
    %1452 = vdwg.mxu0
    %v1453 = vxor.u32 %v1450, 2147483648
    %v1454 = vmul.f32 %v1453, 1.442695
    %v1455 = vpow.pop %v1454
    %v1456 = vadd.f32 %v1455, 1.0
    %v1457 = vrcp.pop %v1456
    %v1458 = vmul.f32 1.0, %v1457
    %v1459 = vtanh.pop %v1450
    %v1460 = vmul.f32 %v1458, %v1267
    %1462 = vrot.lane.b32.xlu0 %v1459, 32
    %v1463 = vpop.permute.xlu0 %1462
    %v1465 = vmul.f32 %v1458, %v1463
    %1467 = vrot.lane.b32.xlu0 %v1465, 32
    %v1468 = vpop.permute.xlu0 %1467
    %v1470 = vadd.f32 %v1460, %v1468
    %v1471 = vtanh.pop %v1470
    %1473 = vrot.lane.b32.xlu0 %v1471, 32
    %v1474 = vpop.permute.xlu0 %1473
    %v1476 = vmul.f32 %v1458, %v1474
    %v1477 = vadd.f32 %v1274, %v1476
    %s1478 = scalar_lea.vmem [#allocation2], 112
    %v1479 = vld [vmem:[%s1478] sm:$0xff]
    %v1480 = vld [vmem:[%s1478 + $0x8] sm:$0xff]
    %1482 = vrot.lane.b32.xlu0 %v1376, 64
    %v1483 = vpop.permute.xlu0 %1482
    %v1484 = vsel %vm66, %v1483, 0
    %1486 = vmatprep.subr.mxu0 0.0
    %1487 = vmatpush1.msra.mxu0 %v56
    %1488 = vmatprep.subr.mxu0 0.0
    %1489 = vmatpush1.msra.mxu0 %v57
    %1490 = vmatprep.subr.mxu0 0.0
    %1491 = vmatpush1.msra.mxu0 %v58
    %1492 = vmatprep.subr.mxu0 0.0
    %1493 = vmatpush1.msra.mxu0 %v59
    %1494 = vmatprep.subr.mxu0 0.0
    %1495 = vmatpush1.msra.mxu0 0.0
    %1496 = vmatprep.subr.mxu0 0.0
    %1497 = vmatpush1.msra.mxu0 0.0
    %1498 = vmatprep.subr.mxu0 0.0
    %1499 = vmatpush1.msra.mxu0 0.0
    %1500 = vmatprep.subr.mxu0 0.0
    %1501 = vmatpush1.msra.mxu0 0.0
    %1502 = vmatprep.subr.mxu0 0.0
    %1503 = vmatpush1.msra.mxu0 0.0
    %1504 = vmatprep.subr.mxu0 0.0
    %1505 = vmatpush1.msra.mxu0 0.0
    %1506 = vmatprep.subr.mxu0 0.0
    %1507 = vmatpush1.msra.mxu0 0.0
    %1508 = vmatprep.subr.mxu0 0.0
    %1509 = vmatpush1.msra.mxu0 0.0
    %1510 = vmatprep.subr.mxu0 0.0
    %1511 = vmatpush1.msra.mxu0 0.0
    %1512 = vmatprep.subr.mxu0 0.0
    %1513 = vmatpush1.msra.mxu0 0.0
    %1514 = vmatprep.subr.mxu0 0.0
    %1515 = vmatpush1.msra.mxu0 0.0
    %1516 = vmatprep.subr.mxu0 0.0
    %1517 = vmatpush1.msra.mxu0 0.0
    %1518 = vmatprep.subr.mxu0 0.0
    %1519 = vmatpush1.msra.mxu0 0.0
    %1520 = vmatprep.subr.mxu0 0.0
    %1521 = vmatpush1.msra.mxu0 0.0
    %1522 = vmatprep.subr.mxu0 0.0
    %1523 = vmatpush1.msra.mxu0 0.0
    %1524 = vmatprep.subr.mxu0 0.0
    %1525 = vmatpush1.msra.mxu0 0.0
    %1526 = vmatprep.subr.mxu0 0.0
    %1527 = vmatpush1.msra.mxu0 0.0
    %1528 = vmatprep.subr.mxu0 0.0
    %1529 = vmatpush1.msra.mxu0 0.0
    %1530 = vmatprep.subr.mxu0 0.0
    %1531 = vmatpush1.msra.mxu0 0.0
    %1532 = vmatprep.subr.mxu0 0.0
    %1533 = vmatpush1.msra.mxu0 0.0
    %1534 = vmatprep.subr.mxu0 0.0
    %1535 = vmatpush1.msra.mxu0 0.0
    %1536 = vmatprep.subr.mxu0 0.0
    %1537 = vmatpush1.msra.mxu0 0.0
    %1538 = vmatprep.subr.mxu0 0.0
    %1539 = vmatpush1.msra.mxu0 0.0
    %1540 = vmatprep.subr.mxu0 0.0
    %1541 = vmatpush1.msra.mxu0 0.0
    %1542 = vmatprep.subr.mxu0 0.0
    %1543 = vmatpush1.msra.mxu0 0.0
    %1544 = vmatprep.subr.mxu0 0.0
    %1545 = vmatpush1.msra.mxu0 0.0
    %1546 = vmatprep.subr.mxu0 0.0
    %1547 = vmatpush1.msra.mxu0 0.0
    %1548 = vmatprep.subr.mxu0 0.0
    %1549 = vmatpush1.msra.mxu0 0.0
    %1550 = vmatprep.mubr.f32.mxu0 0.0
    %1551 = vmatmul.mubr.f32.gmra.mrb[0].mxu0 %v1484
    %v1552 = vpop.f32.mrb[0].mxu0
    %v1553 = vadd.f32 %v1479, %v1552
    %v1554 = vpop.f32.mrb[0].mxu0
    %1555 = vdwg.mxu0
    %v1556 = vxor.u32 %v1553, 2147483648
    %v1557 = vmul.f32 %v1556, 1.442695
    %v1558 = vpow.pop %v1557
    %v1559 = vadd.f32 %v1558, 1.0
    %v1560 = vrcp.pop %v1559
    %v1561 = vmul.f32 1.0, %v1560
    %v1562 = vtanh.pop %v1553
    %v1563 = vmul.f32 %v1561, %v1370
    %1565 = vrot.lane.b32.xlu0 %v1562, 32
    %v1566 = vpop.permute.xlu0 %1565
    %v1568 = vmul.f32 %v1561, %v1566
    %1570 = vrot.lane.b32.xlu0 %v1568, 32
    %v1571 = vpop.permute.xlu0 %1570
    %v1573 = vadd.f32 %v1563, %v1571
    %v1574 = vtanh.pop %v1573
    %1576 = vrot.lane.b32.xlu0 %v1574, 32
    %v1577 = vpop.permute.xlu0 %1576
    %v1579 = vmul.f32 %v1561, %v1577
    %v1580 = vadd.f32 %v1377, %v1579
    %1582 = vrot.lane.b32.xlu0 %v1476, 64
    %v1583 = vpop.permute.xlu0 %1582
    %v1584 = vsel %vm66, %v1583, 0
    %1586 = vmatprep.subr.mxu0 0.0
    %1587 = vmatpush1.msra.mxu0 %v60
    %1588 = vmatprep.subr.mxu0 0.0
    %1589 = vmatpush1.msra.mxu0 %v61
    %1590 = vmatprep.subr.mxu0 0.0
    %1591 = vmatpush1.msra.mxu0 %v62
    %1592 = vmatprep.subr.mxu0 0.0
    %1593 = vmatpush1.msra.mxu0 %v63
    %1594 = vmatprep.subr.mxu0 0.0
    %1595 = vmatpush1.msra.mxu0 0.0
    %1596 = vmatprep.subr.mxu0 0.0
    %1597 = vmatpush1.msra.mxu0 0.0
    %1598 = vmatprep.subr.mxu0 0.0
    %1599 = vmatpush1.msra.mxu0 0.0
    %1600 = vmatprep.subr.mxu0 0.0
    %1601 = vmatpush1.msra.mxu0 0.0
    %1602 = vmatprep.subr.mxu0 0.0
    %1603 = vmatpush1.msra.mxu0 0.0
    %1604 = vmatprep.subr.mxu0 0.0
    %1605 = vmatpush1.msra.mxu0 0.0
    %1606 = vmatprep.subr.mxu0 0.0
    %1607 = vmatpush1.msra.mxu0 0.0
    %1608 = vmatprep.subr.mxu0 0.0
    %1609 = vmatpush1.msra.mxu0 0.0
    %1610 = vmatprep.subr.mxu0 0.0
    %1611 = vmatpush1.msra.mxu0 0.0
    %1612 = vmatprep.subr.mxu0 0.0
    %1613 = vmatpush1.msra.mxu0 0.0
    %1614 = vmatprep.subr.mxu0 0.0
    %1615 = vmatpush1.msra.mxu0 0.0
    %1616 = vmatprep.subr.mxu0 0.0
    %1617 = vmatpush1.msra.mxu0 0.0
    %1618 = vmatprep.subr.mxu0 0.0
    %1619 = vmatpush1.msra.mxu0 0.0
    %1620 = vmatprep.subr.mxu0 0.0
    %1621 = vmatpush1.msra.mxu0 0.0
    %1622 = vmatprep.subr.mxu0 0.0
    %1623 = vmatpush1.msra.mxu0 0.0
    %1624 = vmatprep.subr.mxu0 0.0
    %1625 = vmatpush1.msra.mxu0 0.0
    %1626 = vmatprep.subr.mxu0 0.0
    %1627 = vmatpush1.msra.mxu0 0.0
    %1628 = vmatprep.subr.mxu0 0.0
    %1629 = vmatpush1.msra.mxu0 0.0
    %1630 = vmatprep.subr.mxu0 0.0
    %1631 = vmatpush1.msra.mxu0 0.0
    %1632 = vmatprep.subr.mxu0 0.0
    %1633 = vmatpush1.msra.mxu0 0.0
    %1634 = vmatprep.subr.mxu0 0.0
    %1635 = vmatpush1.msra.mxu0 0.0
    %1636 = vmatprep.subr.mxu0 0.0
    %1637 = vmatpush1.msra.mxu0 0.0
    %1638 = vmatprep.subr.mxu0 0.0
    %1639 = vmatpush1.msra.mxu0 0.0
    %1640 = vmatprep.subr.mxu0 0.0
    %1641 = vmatpush1.msra.mxu0 0.0
    %1642 = vmatprep.subr.mxu0 0.0
    %1643 = vmatpush1.msra.mxu0 0.0
    %1644 = vmatprep.subr.mxu0 0.0
    %1645 = vmatpush1.msra.mxu0 0.0
    %1646 = vmatprep.subr.mxu0 0.0
    %1647 = vmatpush1.msra.mxu0 0.0
    %1648 = vmatprep.subr.mxu0 0.0
    %1649 = vmatpush1.msra.mxu0 0.0
    %1650 = vmatprep.mubr.f32.mxu0 0.0
    %1651 = vmatmul.mubr.f32.gmra.mrb[0].mxu0 %v1584
    %v1652 = vpop.f32.mrb[0].mxu0
    %v1653 = vadd.f32 %v1480, %v1652
    %v1654 = vpop.f32.mrb[0].mxu0
    %1655 = vdwg.mxu0
    %v1656 = vxor.u32 %v1653, 2147483648
    %v1657 = vmul.f32 %v1656, 1.442695
    %v1658 = vpow.pop %v1657
    %v1659 = vadd.f32 %v1658, 1.0
    %v1660 = vrcp.pop %v1659
    %v1661 = vmul.f32 1.0, %v1660
    %v1662 = vtanh.pop %v1653
    %v1663 = vmul.f32 %v1661, %v1470
    %1665 = vrot.lane.b32.xlu0 %v1662, 32
    %v1666 = vpop.permute.xlu0 %1665
    %v1668 = vmul.f32 %v1661, %v1666
    %1670 = vrot.lane.b32.xlu0 %v1668, 32
    %v1671 = vpop.permute.xlu0 %1670
    %v1673 = vadd.f32 %v1663, %v1671
    %v1674 = vtanh.pop %v1673
    %1676 = vrot.lane.b32.xlu0 %v1674, 32
    %v1677 = vpop.permute.xlu0 %1676
    %v1679 = vmul.f32 %v1661, %v1677
    %v1680 = vadd.f32 %v1477, %v1679
    %1682 = vrot.lane.b32.xlu0 %v1580, 64
    %v1683 = vpop.permute.xlu0 %1682
    %1686 = vrot.lane.b32.xlu0 %v1680, 96
    %v1687 = vpop.permute.xlu0 %1686
    %v1689 = vsel %vm66, %v1683, %v1687
    %v1690 = vmul.f32 %v1689, 0.125
    %vm1691 = vcmask 523264
    %1692 = vst.msk [vmem:[#allocation8] sm:$0xff] %vm1691, %v1690
    // Predicated region
    $region26: #{tpu_custom_call.1} parent=1 // pred_check
      _
    $region27: #{tpu_custom_call.1} parent=1 // pred_check_branch
      %1694 = sbr.rel (0) target = $region29
    $region28: #{tpu_custom_call.1} parent=1 // pred_region
      %s1696 = ssub.s32 128, 128
      %1697 = vsyncadd [#allocation4], %s1696
      %s1699 = sshll.u32 [#allocation8], 4
      %s1700 = int_to_ptr.vmem [resolvable:$true] %s1699
      %1702 = dma.vmem_to_hbm [thread:$0]  %s1700, 128, %s3, [#allocation4]
    $region29: #{tpu_custom_call.1} parent=1 // pred_fallthru
      _
    // Predicated region
    $region30: #{tpu_custom_call.1} parent=1 // pred_check
      _
    $region31: #{tpu_custom_call.1} parent=1 // pred_check_branch
      %1704 = sbr.rel (0) target = $region33
    $region32: #{tpu_custom_call.1} parent=1 // pred_region
      %1705 = dma.done [#allocation4], 128
    $region33: #{tpu_custom_call.1} parent=1 // pred_fallthru
      _
    %1706 = vsyncpa [#allocation3], 1
    %1707 = vsyncpa [#allocation6], 1
    %1708 = vsyncpa [#allocation4], 1

</llo_original>
